<compile_context>
chip_gen: v5e
topology: v5e:2x2
jax: 0.10.0
libtpu: 0.0.40
codegen_flags: <defaults>
</compile_context>

<pallas_src>
from functools import partial

import jax
import jax.numpy as jnp
from jax import lax
from jax.experimental import pallas as pl
from jax.experimental.pallas import tpu as pltpu


# --------------------------------------------------------------------------
# Helpers
# --------------------------------------------------------------------------
def _const_spec(shape):
    """Whole-array, grid-constant block for weights/bias.

    Buffered(1): the block index never changes across the grid, so the default
    double-buffer is pure VMEM waste (review item).  Falls back gracefully on
    JAX builds without the pipeline_mode kwarg so the kernel always runs.
    """
    index_map = lambda bi, qi, ki: (0,) * len(shape)
    try:
        return pl.BlockSpec(shape, index_map, pipeline_mode=pl.Buffered(1))
    except (AttributeError, TypeError):
        return pl.BlockSpec(shape, index_map)


def _pick_tile(dim, target=256):
    """Largest tile <= target that evenly divides dim (falls back to full dim)."""
    for t in (target, 256, 128, 64, 32, 16, 8):
        if t <= dim and dim % t == 0:
            return t
    return dim  # tiny/odd axes: take the whole axis (still a legal block)
    # TODO(synk): ragged tails (dim % tile != 0) would need in-kernel masking.


# --------------------------------------------------------------------------
# Fused flash-tiled kernel: projections + online-softmax attention + to_out
# --------------------------------------------------------------------------
def _mha_flash_kernel(x_ref, kvsrc_ref, wq_ref, wk_ref, wv_ref, wo_ref, bo_ref,
                      o_ref, q_scr, acc_scr, *ml_refs, heads, head_dim):
    m_refs = ml_refs[:heads]          # per-head running max,  each (tq, 1) f32
    l_refs = ml_refs[heads:]          # per-head running sum,  each (tq, 1) f32
    ki = pl.program_id(2)
    dt = x_ref.dtype

    # ---- init once per (batch, q-tile): first KV tile ---------------------
    @pl.when(ki == 0)
    def _init():
        # to_q for this q-row tile: one full-N MXU pass.  Scale is pre-folded
        # into the weight on the host.
        q_scr[...] = jnp.dot(x_ref[0], wq_ref[...],
                             preferred_element_type=jnp.float32).astype(q_scr.dtype)
        acc_scr[...] = jnp.zeros_like(acc_scr)
        for h in range(heads):
            m_refs[h][...] = jnp.full_like(m_refs[h], -jnp.inf)
            l_refs[h][...] = jnp.zeros_like(l_refs[h])

    # ---- per KV tile: project K/V for all heads at once (full-N MXU) ------
    kvsrc = kvsrc_ref[0]                                          # (tk, kv_feat)
    k = jnp.dot(kvsrc, wk_ref[...],
                preferred_element_type=jnp.float32).astype(dt)    # (tk, inner)
    v = jnp.dot(kvsrc, wv_ref[...],
                preferred_element_type=jnp.float32).astype(dt)    # (tk, inner)
    q = q_scr[...]                                                # (tq, inner)

    # Online-softmax update per head.  Per-head state lives in VMEM scratch
    # refs, so the static Python loop does not blow up vreg live ranges.
    for h in range(heads):
        lo, hi = h * head_dim, (h + 1) * head_dim
        qh, kh, vh = q[:, lo:hi], k[:, lo:hi], v[:, lo:hi]

        # q @ k^T contracting the last dims (no .T / XLU transpose)
        s = lax.dot_general(qh, kh, (((1,), (1,)), ((), ())),
                            preferred_element_type=jnp.float32)   # (tq, tk)

        m_prev = m_refs[h][...]                                   # (tq, 1)
        m_new = jnp.maximum(m_prev, jnp.max(s, axis=-1, keepdims=True))
        alpha = jnp.exp(m_prev - m_new)                           # (tq, 1)
        p = jnp.exp(s - m_new)                                    # (tq, tk)
        l_refs[h][...] = alpha * l_refs[h][...] + jnp.sum(p, axis=-1, keepdims=True)
        m_refs[h][...] = m_new

        pv = jnp.dot(p.astype(dt), vh,
                     preferred_element_type=jnp.float32)          # (tq, d)
        # head-packed f32 accumulator: one (tq, inner) scratch for all heads
        acc_scr[:, lo:hi] = alpha * acc_scr[:, lo:hi] + pv
        # TODO(synk): attention dropout (p > 0, training mode) not implemented.

    # ---- finalize at the last KV tile --------------------------------------
    @pl.when(ki == pl.num_programs(2) - 1)
    def _finalize():
        # Exact per-head normalization (finalize-only -> negligible cost,
        # removes the approx-reciprocal accuracy concern).
        for h in range(heads):
            lo, hi = h * head_dim, (h + 1) * head_dim
            acc_scr[:, lo:hi] = acc_scr[:, lo:hi] / l_refs[h][...]
        # to_out as ONE full-K (inner) matmul from the head-packed scratch,
        # instead of `heads` small-K matmuls + per-head f32 adds.
        out = jnp.dot(acc_scr[...].astype(dt), wo_ref[...],
                      preferred_element_type=jnp.float32)
        o_ref[0] = (out + bo_ref[...].astype(jnp.float32)).astype(o_ref.dtype)


# --------------------------------------------------------------------------
# One-time host-side weight prep (do at parameter creation, NOT per call)
# --------------------------------------------------------------------------
def prepare_params(params, heads):
    wq_t, wkv_t, wo_t, bo = params     # weights stored transposed: (in, out)
    inner = wq_t.shape[1]
    head_dim = inner // heads
    scale = head_dim ** (-0.5)
    wk_t = wkv_t[:, :inner]
    wv_t = wkv_t[:, inner:]
    prepared = {
        "wq_scaled": wq_t * scale,     # softmax scale folded into to_q
        "wk": wk_t, "wv": wv_t,        # cross-attention (explicit kv) path
        "wo": wo_t, "bo_row": bo.reshape(1, -1),
        "head_dim": head_dim,
    }
    # Self path (kv=None): kv = q = x @ Wq, so k = (x@Wq)@Wk = x @ (Wq@Wk).
    # Mathematically exact (summation reorder only); valid when kv_dim == inner.
    if wkv_t.shape[0] == inner:
        prepared["wk_self"] = wq_t @ wk_t
        prepared["wv_self"] = wq_t @ wv_t
    return prepared


# --------------------------------------------------------------------------
# Module forward
# --------------------------------------------------------------------------
def multi_head_attention(x, prepared, heads, kv=None, *, q_tile=256, kv_tile=256):
    wq, wo, bo_row = prepared["wq_scaled"], prepared["wo"], prepared["bo_row"]
    head_dim = prepared["head_dim"]
    inner = wq.shape[1]
    b, n, q_dim_in = x.shape
    q_dim_out = wo.shape[1]

    if kv is None:
        assert "wk_self" in prepared, "kv=None path requires q_dim == heads*head_dim"
        kvsrc, wk, wv = x, prepared["wk_self"], prepared["wv_self"]
    else:
        kvsrc, wk, wv = kv, prepared["wk"], prepared["wv"]
    m, kv_feat = kvsrc.shape[1], kvsrc.shape[2]

    tq = _pick_tile(n, q_tile)
    tk = _pick_tile(m, kv_tile)
    assert n % tq == 0 and m % tk == 0
    grid = (b, n // tq, m // tk)     # kv-tile (reduction) axis innermost

    kernel = partial(_mha_flash_kernel, heads=heads, head_dim=head_dim)

    in_specs = [
        pl.BlockSpec((1, tq, q_dim_in), lambda bi, qi, ki: (bi, qi, 0)),
        pl.BlockSpec((1, tk, kv_feat), lambda bi, qi, ki: (bi, ki, 0)),
        _const_spec(wq.shape),
        _const_spec(wk.shape),
        _const_spec(wv.shape),
        _const_spec(wo.shape),
        _const_spec(bo_row.shape),
    ]
    out_spec = pl.BlockSpec((1, tq, q_dim_out), lambda bi, qi, ki: (bi, qi, 0))

    scratch_shapes = (
        [pltpu.VMEM((tq, inner), x.dtype),        # projected q tile (all heads)
         pltpu.VMEM((tq, inner), jnp.float32)]    # head-packed flash accumulator
        + [pltpu.VMEM((tq, 1), jnp.float32) for _ in range(2 * heads)]  # m_h, l_h
    )

    # ---- explicit VMEM budget (re-derived from the tiles; review item) ----
    itemsize = x.dtype.itemsize
    weight_bytes = itemsize * (wq.size + wk.size + wv.size + wo.size + bo_row.size)
    io_bytes = 2 * itemsize * (tq * q_dim_in + tk * kv_feat + tq * q_dim_out)
    scratch_bytes = tq * inner * (itemsize + 4) + 2 * heads * tq * 128 * 4
    est = weight_bytes + io_bytes + scratch_bytes
    vmem_limit = int(min(64 * 2**20, max(32 * 2**20, 2 * est)))  # <= v7x physical

    flops = 2 * b * (n * q_dim_in * inner                       # to_q
                     + (n // tq) * m * kv_feat * 2 * inner      # to_kv per q-tile
                     + 2 * n * m * inner                        # q@k^T and p@v
                     + n * inner * q_dim_out)                   # to_out
    transcendentals = b * heads * n * (m + m // tk)             # exp(p), exp(alpha)
    bytes_accessed = itemsize * (x.size + b * (n // tq) * m * kv_feat
                                 + wq.size + wk.size + wv.size + wo.size
                                 + bo_row.size + b * n * q_dim_out)

    return pl.pallas_call(
        kernel,
        out_shape=jax.ShapeDtypeStruct((b, n, q_dim_out), x.dtype),
        grid=grid,
        in_specs=in_specs,
        out_specs=out_spec,
        scratch_shapes=scratch_shapes,
        compiler_params=pltpu.CompilerParams(
            # two parallel axes (batch, q-tiles) -> both v7x TCs stay busy;
            # kv axis is the sequential flash-accumulation axis.
            dimension_semantics=("parallel", "parallel", "arbitrary"),
            vmem_limit_bytes=vmem_limit),
        cost_estimate=pl.CostEstimate(
            flops=int(flops), transcendentals=int(transcendentals),
            bytes_accessed=int(bytes_accessed)),
    )(x, kvsrc, wq, wk, wv, wo, bo_row)


# --------------------------------------------------------------------------
# Pure-JAX reference (correctness sanity check)
# --------------------------------------------------------------------------
def reference(x, params, heads, kv=None):
    wq_t, wkv_t, wo_t, bo = params
    b, n, _ = x.shape
    inner = wq_t.shape[1]
    d = inner // heads
    q = x @ wq_t
    if kv is None:
        kv = q
    kvp = kv @ wkv_t
    k, v = kvp[..., :inner], kvp[..., inner:]

    def sh(t):
        return t.reshape(b, -1, heads, d).transpose(0, 2, 1, 3)

    qh, kh, vh = sh(q), sh(k), sh(v)
    sim = jnp.einsum("bhid,bhjd->bhij", qh, kh) * (d ** -0.5)
    attn = jax.nn.softmax(sim, axis=-1)
    out = jnp.einsum("bhij,bhjd->bhid", attn, vh)
    out = out.transpose(0, 2, 1, 3).reshape(b, n, inner)
    return out @ wo_t + bo


# --------------------------------------------------------------------------
if __name__ == "__main__":
    # Small but tiling-exercising shapes; kv=None path requires q_dim == inner.
    heads, head_dim = 2, 64
    inner = heads * head_dim          # 128
    q_dim = inner                     # 128
    b, n = 2, 128

    key = jax.random.PRNGKey(0)
    kx, kq, kkv, ko, kb, kc = jax.random.split(key, 6)

    x = jax.random.normal(kx, (b, n, q_dim), dtype=jnp.float32)
    wq_t = 0.05 * jax.random.normal(kq, (q_dim, inner), dtype=jnp.float32)
    wkv_t = 0.05 * jax.random.normal(kkv, (q_dim, 2 * inner), dtype=jnp.float32)
    wo_t = 0.05 * jax.random.normal(ko, (inner, q_dim), dtype=jnp.float32)
    bo = 0.05 * jax.random.normal(kb, (q_dim,), dtype=jnp.float32)
    params = (wq_t, wkv_t, wo_t, bo)

    prepared = prepare_params(params, heads)   # one-time host-side prep

    # Self-attention path (kv=None): grid = (2, 2, 2), flash over 2 KV tiles.
    out = jax.block_until_ready(
        multi_head_attention(x, prepared, heads, q_tile=64, kv_tile=64))
    ref = reference(x, params, heads)
    assert out.shape == (b, n, q_dim)
    assert jnp.allclose(out, ref, atol=2e-3, rtol=2e-3), "self-attention mismatch"

    # Cross-attention path (explicit kv, m != n): grid = (2, 2, 3).
    m_len = 192
    kv_in = jax.random.normal(kc, (b, m_len, q_dim), dtype=jnp.float32)
    out_c = jax.block_until_ready(
        multi_head_attention(x, prepared, heads, kv=kv_in, q_tile=64, kv_tile=64))
    ref_c = reference(x, params, heads, kv=kv_in)
    assert out_c.shape == (b, n, q_dim)
    assert jnp.allclose(out_c, ref_c, atol=2e-3, rtol=2e-3), "cross-attention mismatch"

    print("KERNEL_OK")
</pallas_src>

<mosaic_0001>
module attributes {stable_mosaic.version = 11 : i64} {
  func.func @_mha_flash_kernel(%arg0: i32, %arg1: i32, %arg2: i32, %arg3: memref<1x64x128xf32, #tpu.memory_space<vmem>>, %arg4: memref<1x64x128xf32, #tpu.memory_space<vmem>>, %arg5: memref<128x128xf32, #tpu.memory_space<vmem>>, %arg6: memref<128x128xf32, #tpu.memory_space<vmem>>, %arg7: memref<128x128xf32, #tpu.memory_space<vmem>>, %arg8: memref<128x128xf32, #tpu.memory_space<vmem>>, %arg9: memref<1x128xf32, #tpu.memory_space<vmem>>, %arg10: memref<1x64x128xf32, #tpu.memory_space<vmem>>, %arg11: memref<64x128xf32, #tpu.memory_space<vmem>>, %arg12: memref<64x128xf32, #tpu.memory_space<vmem>>, %arg13: memref<64x1xf32, #tpu.memory_space<vmem>>, %arg14: memref<64x1xf32, #tpu.memory_space<vmem>>, %arg15: memref<64x1xf32, #tpu.memory_space<vmem>>, %arg16: memref<64x1xf32, #tpu.memory_space<vmem>>) attributes {dimension_semantics = [#tpu.dimension_semantics<parallel>, #tpu.dimension_semantics<parallel>, #tpu.dimension_semantics<arbitrary>], iteration_bounds = array<i64: 2, 2, 2>, scalar_prefetch = 0 : i64, scratch_operands = 6 : i64, tpu.core_type = #tpu.core_type<tc>, window_params = [{transform_indices = @transform_0, window_bounds = array<i64: 1, 64, 128>}, {transform_indices = @transform_1, window_bounds = array<i64: 1, 64, 128>}, {pipeline_mode = #tpu.pipeline_mode<synchronous>, transform_indices = @transform_2, window_bounds = array<i64: 128, 128>}, {pipeline_mode = #tpu.pipeline_mode<synchronous>, transform_indices = @transform_3, window_bounds = array<i64: 128, 128>}, {pipeline_mode = #tpu.pipeline_mode<synchronous>, transform_indices = @transform_4, window_bounds = array<i64: 128, 128>}, {pipeline_mode = #tpu.pipeline_mode<synchronous>, transform_indices = @transform_5, window_bounds = array<i64: 128, 128>}, {pipeline_mode = #tpu.pipeline_mode<synchronous>, transform_indices = @transform_6, window_bounds = array<i64: 1, 128>}, {transform_indices = @transform_7, window_bounds = array<i64: 1, 64, 128>}]} {
    %c0_i32 = arith.constant 0 : i32
    %0 = arith.cmpi eq, %arg2, %c0_i32 : i32
    %1 = arith.extui %0 : i1 to i32
    %c0_i32_0 = arith.constant 0 : i32
    %2 = arith.cmpi ne, %1, %c0_i32_0 : i32
    scf.if %2 {
      %c0_42 = arith.constant 0 : index
      %c0_43 = arith.constant 0 : index
      %c0_44 = arith.constant 0 : index
      %65 = vector.load %arg3[%c0_42, %c0_43, %c0_44] : memref<1x64x128xf32, #tpu.memory_space<vmem>>, vector<1x64x128xf32>
      %66 = vector.shape_cast %65 : vector<1x64x128xf32> to vector<64x128xf32>
      %c0_45 = arith.constant 0 : index
      %c0_46 = arith.constant 0 : index
      %67 = vector.load %arg5[%c0_45, %c0_46] : memref<128x128xf32, #tpu.memory_space<vmem>>, vector<128x128xf32>
      %cst_47 = arith.constant dense<0.000000e+00> : vector<64x128xf32>
      %68 = tpu.matmul %66, %67, %cst_47 {dimension_numbers = #tpu.dot_dimension_numbers<[1], [0], [0], [1], [0, 0, 1, 1], [], []>} : vector<64x128xf32>, vector<128x128xf32>, vector<64x128xf32> -> vector<64x128xf32>
      %c0_48 = arith.constant 0 : index
      %c0_49 = arith.constant 0 : index
      %69 = vector.load %arg11[%c0_48, %c0_49] : memref<64x128xf32, #tpu.memory_space<vmem>>, vector<64x128xf32>
      tpu.vector_store %arg11[%c0_48, %c0_49], %68 {strides = array<i32>} : memref<64x128xf32, #tpu.memory_space<vmem>>, vector<64x128xf32>,
      %cst_50 = arith.constant 0.000000e+00 : f32
      %70 = vector.broadcast %cst_50 : f32 to vector<64x128xf32>
      %c0_51 = arith.constant 0 : index
      %c0_52 = arith.constant 0 : index
      %71 = vector.load %arg12[%c0_51, %c0_52] : memref<64x128xf32, #tpu.memory_space<vmem>>, vector<64x128xf32>
      tpu.vector_store %arg12[%c0_51, %c0_52], %70 {strides = array<i32>} : memref<64x128xf32, #tpu.memory_space<vmem>>, vector<64x128xf32>,
      %cst_53 = arith.constant 0xFF800000 : f32
      %72 = vector.broadcast %cst_53 : f32 to vector<64x1xf32>
      %c0_54 = arith.constant 0 : index
      %c0_55 = arith.constant 0 : index
      %73 = vector.load %arg13[%c0_54, %c0_55] : memref<64x1xf32, #tpu.memory_space<vmem>>, vector<64x1xf32>
      tpu.vector_store %arg13[%c0_54, %c0_55], %72 {strides = array<i32>} : memref<64x1xf32, #tpu.memory_space<vmem>>, vector<64x1xf32>,
      %cst_56 = arith.constant 0.000000e+00 : f32
      %74 = vector.broadcast %cst_56 : f32 to vector<64x1xf32>
      %c0_57 = arith.constant 0 : index
      %c0_58 = arith.constant 0 : index
      %75 = vector.load %arg15[%c0_57, %c0_58] : memref<64x1xf32, #tpu.memory_space<vmem>>, vector<64x1xf32>
      tpu.vector_store %arg15[%c0_57, %c0_58], %74 {strides = array<i32>} : memref<64x1xf32, #tpu.memory_space<vmem>>, vector<64x1xf32>,
      %cst_59 = arith.constant 0xFF800000 : f32
      %76 = vector.broadcast %cst_59 : f32 to vector<64x1xf32>
      %c0_60 = arith.constant 0 : index
      %c0_61 = arith.constant 0 : index
      %77 = vector.load %arg14[%c0_60, %c0_61] : memref<64x1xf32, #tpu.memory_space<vmem>>, vector<64x1xf32>
      tpu.vector_store %arg14[%c0_60, %c0_61], %76 {strides = array<i32>} : memref<64x1xf32, #tpu.memory_space<vmem>>, vector<64x1xf32>,
      %cst_62 = arith.constant 0.000000e+00 : f32
      %78 = vector.broadcast %cst_62 : f32 to vector<64x1xf32>
      %c0_63 = arith.constant 0 : index
      %c0_64 = arith.constant 0 : index
      %79 = vector.load %arg16[%c0_63, %c0_64] : memref<64x1xf32, #tpu.memory_space<vmem>>, vector<64x1xf32>
      tpu.vector_store %arg16[%c0_63, %c0_64], %78 {strides = array<i32>} : memref<64x1xf32, #tpu.memory_space<vmem>>, vector<64x1xf32>,
    } else {
    }
    %c0 = arith.constant 0 : index
    %c0_1 = arith.constant 0 : index
    %c0_2 = arith.constant 0 : index
    %3 = vector.load %arg4[%c0, %c0_1, %c0_2] : memref<1x64x128xf32, #tpu.memory_space<vmem>>, vector<1x64x128xf32>
    %4 = vector.shape_cast %3 : vector<1x64x128xf32> to vector<64x128xf32>
    %c0_3 = arith.constant 0 : index
    %c0_4 = arith.constant 0 : index
    %5 = vector.load %arg6[%c0_3, %c0_4] : memref<128x128xf32, #tpu.memory_space<vmem>>, vector<128x128xf32>
    %cst = arith.constant dense<0.000000e+00> : vector<64x128xf32>
    %6 = tpu.matmul %4, %5, %cst {dimension_numbers = #tpu.dot_dimension_numbers<[1], [0], [0], [1], [0, 0, 1, 1], [], []>} : vector<64x128xf32>, vector<128x128xf32>, vector<64x128xf32> -> vector<64x128xf32>
    %c0_5 = arith.constant 0 : index
    %c0_6 = arith.constant 0 : index
    %7 = vector.load %arg7[%c0_5, %c0_6] : memref<128x128xf32, #tpu.memory_space<vmem>>, vector<128x128xf32>
    %cst_7 = arith.constant dense<0.000000e+00> : vector<64x128xf32>
    %8 = tpu.matmul %4, %7, %cst_7 {dimension_numbers = #tpu.dot_dimension_numbers<[1], [0], [0], [1], [0, 0, 1, 1], [], []>} : vector<64x128xf32>, vector<128x128xf32>, vector<64x128xf32> -> vector<64x128xf32>
    %c0_8 = arith.constant 0 : index
    %c0_9 = arith.constant 0 : index
    %9 = vector.load %arg11[%c0_8, %c0_9] : memref<64x128xf32, #tpu.memory_space<vmem>>, vector<64x128xf32>
    %10 = vector.extract_strided_slice %9 {offsets = [0, 0], sizes = [64, 64], strides = [1, 1]} : vector<64x128xf32> to vector<64x64xf32>
    %11 = vector.extract_strided_slice %6 {offsets = [0, 0], sizes = [64, 64], strides = [1, 1]} : vector<64x128xf32> to vector<64x64xf32>
    %12 = vector.extract_strided_slice %8 {offsets = [0, 0], sizes = [64, 64], strides = [1, 1]} : vector<64x128xf32> to vector<64x64xf32>
    %cst_10 = arith.constant dense<0.000000e+00> : vector<64x64xf32>
    %13 = tpu.matmul %10, %11, %cst_10 {dimension_numbers = #tpu.dot_dimension_numbers<[1], [1], [0], [0], [0, 0, 1, 0], [], []>} : vector<64x64xf32>, vector<64x64xf32>, vector<64x64xf32> -> vector<64x64xf32>
    %c0_11 = arith.constant 0 : index
    %c0_12 = arith.constant 0 : index
    %14 = vector.load %arg13[%c0_11, %c0_12] : memref<64x1xf32, #tpu.memory_space<vmem>>, vector<64x1xf32>
    %cst_13 = arith.constant dense<0xFF800000> : vector<64xf32>
    %15 = vector.multi_reduction <maximumf>, %13, %cst_13 [1] : vector<64x64xf32> to vector<64xf32>
    %16 = vector.shape_cast %15 : vector<64xf32> to vector<64x1xf32>
    %17 = arith.maximumf %14, %16 : vector<64x1xf32>
    %18 = arith.subf %14, %17 : vector<64x1xf32>
    %19 = math.exp %18 : vector<64x1xf32>
    %20 = vector.broadcast %17 : vector<64x1xf32> to vector<64x64xf32>
    %21 = arith.subf %13, %20 : vector<64x64xf32>
    %22 = math.exp %21 : vector<64x64xf32>
    %c0_14 = arith.constant 0 : index
    %c0_15 = arith.constant 0 : index
    %23 = vector.load %arg15[%c0_14, %c0_15] : memref<64x1xf32, #tpu.memory_space<vmem>>, vector<64x1xf32>
    %24 = arith.mulf %19, %23 : vector<64x1xf32>
    %cst_16 = arith.constant dense<0.000000e+00> : vector<64xf32>
    %25 = vector.multi_reduction <add>, %22, %cst_16 [1] : vector<64x64xf32> to vector<64xf32>
    %26 = vector.shape_cast %25 : vector<64xf32> to vector<64x1xf32>
    %27 = arith.addf %24, %26 : vector<64x1xf32>
    %c0_17 = arith.constant 0 : index
    %c0_18 = arith.constant 0 : index
    %28 = vector.load %arg15[%c0_17, %c0_18] : memref<64x1xf32, #tpu.memory_space<vmem>>, vector<64x1xf32>
    tpu.vector_store %arg15[%c0_17, %c0_18], %27 {strides = array<i32>} : memref<64x1xf32, #tpu.memory_space<vmem>>, vector<64x1xf32>,
    %c0_19 = arith.constant 0 : index
    %c0_20 = arith.constant 0 : index
    %29 = vector.load %arg13[%c0_19, %c0_20] : memref<64x1xf32, #tpu.memory_space<vmem>>, vector<64x1xf32>
    tpu.vector_store %arg13[%c0_19, %c0_20], %17 {strides = array<i32>} : memref<64x1xf32, #tpu.memory_space<vmem>>, vector<64x1xf32>,
    %cst_21 = arith.constant dense<0.000000e+00> : vector<64x64xf32>
    %30 = tpu.matmul %22, %12, %cst_21 {dimension_numbers = #tpu.dot_dimension_numbers<[1], [0], [0], [1], [0, 0, 1, 1], [], []>} : vector<64x64xf32>, vector<64x64xf32>, vector<64x64xf32> -> vector<64x64xf32>
    %c0_22 = arith.constant 0 : index
    %c0_23 = arith.constant 0 : index
    %31 = vector.load %arg12[%c0_22, %c0_23] : memref<64x128xf32, #tpu.memory_space<vmem>>, vector<64x64xf32>
    %32 = vector.broadcast %19 : vector<64x1xf32> to vector<64x64xf32>
    %33 = arith.mulf %32, %31 : vector<64x64xf32>
    %34 = arith.addf %33, %30 : vector<64x64xf32>
    %c0_24 = arith.constant 0 : index
    %c0_25 = arith.constant 0 : index
    %35 = vector.load %arg12[%c0_24, %c0_25] : memref<64x128xf32, #tpu.memory_space<vmem>>, vector<64x64xf32>
    tpu.vector_store %arg12[%c0_24, %c0_25], %34 {strides = array<i32>} : memref<64x128xf32, #tpu.memory_space<vmem>>, vector<64x64xf32>,
    %36 = vector.extract_strided_slice %9 {offsets = [0, 64], sizes = [64, 64], strides = [1, 1]} : vector<64x128xf32> to vector<64x64xf32>
    %37 = vector.extract_strided_slice %6 {offsets = [0, 64], sizes = [64, 64], strides = [1, 1]} : vector<64x128xf32> to vector<64x64xf32>
    %38 = vector.extract_strided_slice %8 {offsets = [0, 64], sizes = [64, 64], strides = [1, 1]} : vector<64x128xf32> to vector<64x64xf32>
    %cst_26 = arith.constant dense<0.000000e+00> : vector<64x64xf32>
    %39 = tpu.matmul %36, %37, %cst_26 {dimension_numbers = #tpu.dot_dimension_numbers<[1], [1], [0], [0], [0, 0, 1, 0], [], []>} : vector<64x64xf32>, vector<64x64xf32>, vector<64x64xf32> -> vector<64x64xf32>
    %c0_27 = arith.constant 0 : index
    %c0_28 = arith.constant 0 : index
    %40 = vector.load %arg14[%c0_27, %c0_28] : memref<64x1xf32, #tpu.memory_space<vmem>>, vector<64x1xf32>
    %cst_29 = arith.constant dense<0xFF800000> : vector<64xf32>
    %41 = vector.multi_reduction <maximumf>, %39, %cst_29 [1] : vector<64x64xf32> to vector<64xf32>
    %42 = vector.shape_cast %41 : vector<64xf32> to vector<64x1xf32>
    %43 = arith.maximumf %40, %42 : vector<64x1xf32>
    %44 = arith.subf %40, %43 : vector<64x1xf32>
    %45 = math.exp %44 : vector<64x1xf32>
    %46 = vector.broadcast %43 : vector<64x1xf32> to vector<64x64xf32>
    %47 = arith.subf %39, %46 : vector<64x64xf32>
    %48 = math.exp %47 : vector<64x64xf32>
    %c0_30 = arith.constant 0 : index
    %c0_31 = arith.constant 0 : index
    %49 = vector.load %arg16[%c0_30, %c0_31] : memref<64x1xf32, #tpu.memory_space<vmem>>, vector<64x1xf32>
    %50 = arith.mulf %45, %49 : vector<64x1xf32>
    %cst_32 = arith.constant dense<0.000000e+00> : vector<64xf32>
    %51 = vector.multi_reduction <add>, %48, %cst_32 [1] : vector<64x64xf32> to vector<64xf32>
    %52 = vector.shape_cast %51 : vector<64xf32> to vector<64x1xf32>
    %53 = arith.addf %50, %52 : vector<64x1xf32>
    %c0_33 = arith.constant 0 : index
    %c0_34 = arith.constant 0 : index
    %54 = vector.load %arg16[%c0_33, %c0_34] : memref<64x1xf32, #tpu.memory_space<vmem>>, vector<64x1xf32>
    tpu.vector_store %arg16[%c0_33, %c0_34], %53 {strides = array<i32>} : memref<64x1xf32, #tpu.memory_space<vmem>>, vector<64x1xf32>,
    %c0_35 = arith.constant 0 : index
    %c0_36 = arith.constant 0 : index
    %55 = vector.load %arg14[%c0_35, %c0_36] : memref<64x1xf32, #tpu.memory_space<vmem>>, vector<64x1xf32>
    tpu.vector_store %arg14[%c0_35, %c0_36], %43 {strides = array<i32>} : memref<64x1xf32, #tpu.memory_space<vmem>>, vector<64x1xf32>,
    %cst_37 = arith.constant dense<0.000000e+00> : vector<64x64xf32>
    %56 = tpu.matmul %48, %38, %cst_37 {dimension_numbers = #tpu.dot_dimension_numbers<[1], [0], [0], [1], [0, 0, 1, 1], [], []>} : vector<64x64xf32>, vector<64x64xf32>, vector<64x64xf32> -> vector<64x64xf32>
    %c0_38 = arith.constant 0 : index
    %c64 = arith.constant 64 : index
    %57 = vector.load %arg12[%c0_38, %c64] : memref<64x128xf32, #tpu.memory_space<vmem>>, vector<64x64xf32>
    %58 = vector.broadcast %45 : vector<64x1xf32> to vector<64x64xf32>
    %59 = arith.mulf %58, %57 : vector<64x64xf32>
    %60 = arith.addf %59, %56 : vector<64x64xf32>
    %c0_39 = arith.constant 0 : index
    %c64_40 = arith.constant 64 : index
    %61 = vector.load %arg12[%c0_39, %c64_40] : memref<64x128xf32, #tpu.memory_space<vmem>>, vector<64x64xf32>
    tpu.vector_store %arg12[%c0_39, %c64_40], %60 {strides = array<i32>} : memref<64x128xf32, #tpu.memory_space<vmem>>, vector<64x64xf32>,
    %c1_i32 = arith.constant 1 : i32
    %62 = arith.cmpi eq, %arg2, %c1_i32 : i32
    %63 = arith.extui %62 : i1 to i32
    %c0_i32_41 = arith.constant 0 : i32
    %64 = arith.cmpi ne, %63, %c0_i32_41 : i32
    scf.if %64 {
      %c0_42 = arith.constant 0 : index
      %c0_43 = arith.constant 0 : index
      %65 = vector.load %arg12[%c0_42, %c0_43] : memref<64x128xf32, #tpu.memory_space<vmem>>, vector<64x64xf32>
      %c0_44 = arith.constant 0 : index
      %c0_45 = arith.constant 0 : index
      %66 = vector.load %arg15[%c0_44, %c0_45] : memref<64x1xf32, #tpu.memory_space<vmem>>, vector<64x1xf32>
      %67 = vector.broadcast %66 : vector<64x1xf32> to vector<64x64xf32>
      %68 = arith.divf %65, %67 : vector<64x64xf32>
      %c0_46 = arith.constant 0 : index
      %c0_47 = arith.constant 0 : index
      %69 = vector.load %arg12[%c0_46, %c0_47] : memref<64x128xf32, #tpu.memory_space<vmem>>, vector<64x64xf32>
      tpu.vector_store %arg12[%c0_46, %c0_47], %68 {strides = array<i32>} : memref<64x128xf32, #tpu.memory_space<vmem>>, vector<64x64xf32>,
      %c0_48 = arith.constant 0 : index
      %c64_49 = arith.constant 64 : index
      %70 = vector.load %arg12[%c0_48, %c64_49] : memref<64x128xf32, #tpu.memory_space<vmem>>, vector<64x64xf32>
      %c0_50 = arith.constant 0 : index
      %c0_51 = arith.constant 0 : index
      %71 = vector.load %arg16[%c0_50, %c0_51] : memref<64x1xf32, #tpu.memory_space<vmem>>, vector<64x1xf32>
      %72 = vector.broadcast %71 : vector<64x1xf32> to vector<64x64xf32>
      %73 = arith.divf %70, %72 : vector<64x64xf32>
      %c0_52 = arith.constant 0 : index
      %c64_53 = arith.constant 64 : index
      %74 = vector.load %arg12[%c0_52, %c64_53] : memref<64x128xf32, #tpu.memory_space<vmem>>, vector<64x64xf32>
      tpu.vector_store %arg12[%c0_52, %c64_53], %73 {strides = array<i32>} : memref<64x128xf32, #tpu.memory_space<vmem>>, vector<64x64xf32>,
      %c0_54 = arith.constant 0 : index
      %c0_55 = arith.constant 0 : index
      %75 = vector.load %arg12[%c0_54, %c0_55] : memref<64x128xf32, #tpu.memory_space<vmem>>, vector<64x128xf32>
      %c0_56 = arith.constant 0 : index
      %c0_57 = arith.constant 0 : index
      %76 = vector.load %arg8[%c0_56, %c0_57] : memref<128x128xf32, #tpu.memory_space<vmem>>, vector<128x128xf32>
      %cst_58 = arith.constant dense<0.000000e+00> : vector<64x128xf32>
      %77 = tpu.matmul %75, %76, %cst_58 {dimension_numbers = #tpu.dot_dimension_numbers<[1], [0], [0], [1], [0, 0, 1, 1], [], []>} : vector<64x128xf32>, vector<128x128xf32>, vector<64x128xf32> -> vector<64x128xf32>
      %c0_59 = arith.constant 0 : index
      %c0_60 = arith.constant 0 : index
      %78 = vector.load %arg9[%c0_59, %c0_60] : memref<1x128xf32, #tpu.memory_space<vmem>>, vector<1x128xf32>
      %79 = vector.broadcast %78 : vector<1x128xf32> to vector<64x128xf32>
      %80 = arith.addf %77, %79 : vector<64x128xf32>
      %c0_61 = arith.constant 0 : index
      %c0_62 = arith.constant 0 : index
      %c0_63 = arith.constant 0 : index
      %81 = vector.load %arg10[%c0_61, %c0_62, %c0_63] : memref<1x64x128xf32, #tpu.memory_space<vmem>>, vector<1x64x128xf32>
      %82 = vector.shape_cast %81 : vector<1x64x128xf32> to vector<64x128xf32>
      %83 = vector.shape_cast %80 : vector<64x128xf32> to vector<1x64x128xf32>
      tpu.vector_store %arg10[%c0_61, %c0_62, %c0_63], %83 {strides = array<i32>} : memref<1x64x128xf32, #tpu.memory_space<vmem>>, vector<1x64x128xf32>,
    } else {
    }
    return
  }
  func.func @transform_0(%arg0: i32, %arg1: i32, %arg2: i32) -> (i32, i32, i32) {
    %c0_i32 = arith.constant 0 : i32
    %c0_i32_0 = arith.constant 0 : i32
    return %arg0, %arg1, %c0_i32 : i32, i32, i32
  }
  func.func @transform_1(%arg0: i32, %arg1: i32, %arg2: i32) -> (i32, i32, i32) {
    %c0_i32 = arith.constant 0 : i32
    %c0_i32_0 = arith.constant 0 : i32
    return %arg0, %arg2, %c0_i32 : i32, i32, i32
  }
  func.func @transform_2(%arg0: i32, %arg1: i32, %arg2: i32) -> (i32, i32) {
    %c0_i32 = arith.constant 0 : i32
    %c0_i32_0 = arith.constant 0 : i32
    %c0_i32_1 = arith.constant 0 : i32
    return %c0_i32, %c0_i32_0 : i32, i32
  }
  func.func @transform_3(%arg0: i32, %arg1: i32, %arg2: i32) -> (i32, i32) {
    %c0_i32 = arith.constant 0 : i32
    %c0_i32_0 = arith.constant 0 : i32
    %c0_i32_1 = arith.constant 0 : i32
    return %c0_i32, %c0_i32_0 : i32, i32
  }
  func.func @transform_4(%arg0: i32, %arg1: i32, %arg2: i32) -> (i32, i32) {
    %c0_i32 = arith.constant 0 : i32
    %c0_i32_0 = arith.constant 0 : i32
    %c0_i32_1 = arith.constant 0 : i32
    return %c0_i32, %c0_i32_0 : i32, i32
  }
  func.func @transform_5(%arg0: i32, %arg1: i32, %arg2: i32) -> (i32, i32) {
    %c0_i32 = arith.constant 0 : i32
    %c0_i32_0 = arith.constant 0 : i32
    %c0_i32_1 = arith.constant 0 : i32
    return %c0_i32, %c0_i32_0 : i32, i32
  }
  func.func @transform_6(%arg0: i32, %arg1: i32, %arg2: i32) -> (i32, i32) {
    %c0_i32 = arith.constant 0 : i32
    %c0_i32_0 = arith.constant 0 : i32
    %c0_i32_1 = arith.constant 0 : i32
    return %c0_i32, %c0_i32_0 : i32, i32
  }
  func.func @transform_7(%arg0: i32, %arg1: i32, %arg2: i32) -> (i32, i32, i32) {
    %c0_i32 = arith.constant 0 : i32
    %c0_i32_0 = arith.constant 0 : i32
    return %arg0, %arg1, %c0_i32 : i32, i32, i32
  }
}

</mosaic_0001>

<llo_original>
// kernel: tpu_custom_call.1
$region0: #{tpu_custom_call.1}
  #allocation0 [shape = 'u32[]', space=smem, size = 0x4, offset = 0x4, fixed_abs, tag = 'smem constant byte address 0x4 - core index']
  #allocation1 [shape = 'u32[72,128]{1,0:T(1,128)}', space=vmem, size = 0x9000, scoped, tag = 'internal scratch']
  #allocation2 [shape = 'f32[64,128]{1,0:T(8,128)}', space=vmem, size = 0x8000, scoped, tag = 'scratch operand']
  #allocation3 [shape = 'f32[64,128]{1,0:T(8,128)}', space=vmem, size = 0x8000, scoped, tag = 'scratch operand']
  #allocation4 [shape = 'f32[64,1]{1,0:T(8,128)}', space=vmem, size = 0x8000, scoped, tag = 'scratch operand']
  #allocation5 [shape = 'f32[64,1]{1,0:T(8,128)}', space=vmem, size = 0x8000, scoped, tag = 'scratch operand']
  #allocation6 [shape = 'f32[64,1]{1,0:T(8,128)}', space=vmem, size = 0x8000, scoped, tag = 'scratch operand']
  #allocation7 [shape = 'f32[64,1]{1,0:T(8,128)}', space=vmem, size = 0x8000, scoped, tag = 'scratch operand']
  %s0 = inlined_call_operand.hbm [shape: f32[2,128,128], index: 0, kind: input, shape index: {}]
  %s1 = inlined_call_operand.hbm [shape: f32[2,128,128], index: 1, kind: input, shape index: {}]
  %s2 = inlined_call_operand.hbm [shape: f32[128,128], index: 2, kind: input, shape index: {}]
  %s3 = inlined_call_operand.hbm [shape: f32[128,128], index: 3, kind: input, shape index: {}]
  %s4 = inlined_call_operand.hbm [shape: f32[128,128], index: 4, kind: input, shape index: {}]
  %s5 = inlined_call_operand.hbm [shape: f32[128,128], index: 5, kind: input, shape index: {}]
  %s6 = inlined_call_operand.vmem [shape: f32[1,128], index: 6, kind: input, shape index: {}]
  %s7 = inlined_call_operand.hbm [shape: f32[2,128,128], index: 7, kind: output, shape index: {}]
  %s8 = sld [smem:[#allocation0]]
  $region93: #{tpu_custom_call.1} parent=0
    _
  %s10 = ssub.s32 1, %s8
  %s11 = scalar_select 0, %s10, %s8
  $region1: #{tpu_custom_call.1} parent=0
    #allocation8 [shape = 'u8[65536]{0}', space=vmem, size = 0x10000, scoped, tag = 'input window, operand 0']
    #allocation9 [shape = 's32[2]{0}', space=sflag, size = 0x8, scoped, tag = 'scoped memory for tpu_custom_call.1']
    #allocation10 [shape = 's32[2]{0}', space=sflag, size = 0x8, scoped, tag = 'scoped memory for tpu_custom_call.1']
    #allocation11 [shape = 'u8[65536]{0}', space=vmem, size = 0x10000, scoped, tag = 'input window, operand 1']
    #allocation12 [shape = 's32[2]{0}', space=sflag, size = 0x8, scoped, tag = 'scoped memory for tpu_custom_call.1']
    #allocation13 [shape = 'u8[65536]{0}', space=vmem, size = 0x10000, scoped, tag = 'input window, operand 2, single buffered']
    #allocation14 [shape = 'u8[65536]{0}', space=vmem, size = 0x10000, scoped, tag = 'input window, operand 3, single buffered']
    #allocation15 [shape = 's32[1]{0}', space=sflag, size = 0x4, scoped, tag = 'scoped memory for tpu_custom_call.1']
    #allocation16 [shape = 'u8[65536]{0}', space=vmem, size = 0x10000, scoped, tag = 'input window, operand 4, single buffered']
    #allocation17 [shape = 'u8[65536]{0}', space=vmem, size = 0x10000, scoped, tag = 'input window, operand 5, single buffered']
    #allocation18 [shape = 's32[1]{0}', space=sflag, size = 0x4, scoped, tag = 'scoped memory for tpu_custom_call.1']
    #allocation19 [shape = 'u8[65536]{0}', space=vmem, size = 0x10000, scoped, tag = 'output window, operand 0']
    %12 = vsyncpa [#allocation9], 0
    %s13 = scalar_lea.sflag [#allocation9], 1
    %14 = vsyncpa %s13, 0
    %15 = vsyncpa [#allocation12], 0
    %s16 = scalar_lea.sflag [#allocation12], 1
    %17 = vsyncpa %s16, 0
    %18 = vsyncpa [#allocation15], 0
    %19 = vsyncpa [#allocation18], 0
    %20 = vsyncpa [#allocation10], 0
    %s21 = scalar_lea.sflag [#allocation10], 1
    %22 = vsyncpa %s21, 0
    loop: start=0, step=1, limit=10
    $region2: #{tpu_custom_call.1} parent=1 // loop_pre_header
      _
    $region3: #{tpu_custom_call.1} parent=1 // loop_header
      %s24 = sphi 0, %s28
      %p25 = scmp.ge.s32.totalorder %s24, 10
      %s31 = sphi 0, %s50
      %s32 = sphi 0, %s46
      %s33 = sphi 0, %s42
      %s34 = sphi 0, %s31
      %s35 = sphi 0, %s32
      %s36 = sphi 0, %s33
      %s37 = sphi 0, %s34
      %s38 = sphi 0, %s35
      %s39 = sphi 0, %s36
      %s55 = sphi 0, %s57
      %s58 = sphi 0, %s55
      %s59 = sphi 0, %s58
      %s75 = sphi 0, %s59
      %s83 = sphi 0, %s85
      %s86 = sphi 0, %s83
      %s87 = sphi 0, %s86
      %s103 = sphi 0, %s87
      %s107 = sphi 0, %s107
      %s109 = sphi 0, %s107
      %s110 = sphi 0, %s109
      %s124 = sphi 0, %s110
      %s128 = sphi 0, %s128
      %s130 = sphi 0, %s128
      %s131 = sphi 0, %s130
      %s145 = sphi 0, %s131
      %s149 = sphi 0, %s149
      %s151 = sphi 0, %s149
      %s152 = sphi 0, %s151
      %s166 = sphi 0, %s152
      %s170 = sphi 0, %s170
      %s172 = sphi 0, %s170
      %s173 = sphi 0, %s172
      %s187 = sphi 0, %s173
      %s191 = sphi 0, %s191
      %s193 = sphi 0, %s191
      %s194 = sphi 0, %s193
      %s208 = sphi 0, %s194
      %s216 = sphi 0, %s218
      %s219 = sphi 0, %s216
      %s220 = sphi 0, %s219
      %s236 = sphi 0, %s220
    $region4: #{tpu_custom_call.1} parent=1 // loop_header_branch
      %27 = sbr.rel (%p25) target = $region8
    $region5: #{tpu_custom_call.1} parent=1 // loop_body
      %s29 = ssub.s32 %s24, 1
      %s30 = ssub.s32 %s24, 2
      %s40 = sadd.s32 1, %s33
      %p41 = scmp.ge.s32.totalorder %s40, 2
      %s42 = scalar_select %p41, 0, %s40
      %s43 = sadd.s32 1, %s32
      %s44 = scalar_select %p41, %s43, %s32
      %p45 = scmp.ge.s32.totalorder %s44, 2
      %s46 = scalar_select %p45, 0, %s44
      %s47 = sadd.s32 1, %s31
      %s48 = scalar_select %p45, %s47, %s31
      %p49 = scmp.ge.s32.totalorder %s48, 2
      %s50 = scalar_select %p49, 0, %s48
      %s51 = ssub.s32 %s31, %s50
      %s52 = ssub.s32 %s32, %s46
      %s53 = sor.u32 %s51, %s52
      %p54 = scmp.eq.s32.totalorder %s53, 0
      %s56 = sadd.s32 %s55, 1
      %s57 = scalar_select %p54, %s55, %s56
      %p60 = pneg %p54
      %p61 = scmp.eq.s32.totalorder %s24, 7
      %p62 = por %p60, %p61
      %p63 = scmp.ne.s32.totalorder %s55, %s58
      %p64 = scmp.eq.s32.totalorder %s24, 0
      %p65 = por %p63, %p64
      %p66 = scmp.ne.s32.totalorder %s55, %s58
      %p67 = scmp.eq.s32.totalorder %s29, 7
      %p68 = por %p66, %p67
      %p69 = scmp.ne.s32.totalorder %s58, %s59
      %p70 = scmp.eq.s32.totalorder %s29, 0
      %p71 = por %p69, %p70
      %p72 = scmp.ne.s32.totalorder %s58, %s59
      %p73 = scmp.eq.s32.totalorder %s30, 7
      %p74 = por %p72, %p73
      %p76 = scmp.ne.s32.totalorder %s59, %s75
      %p77 = scmp.eq.s32.totalorder %s30, 0
      %p78 = por %p76, %p77
      %s79 = ssub.s32 %s31, %s50
      %s80 = ssub.s32 %s33, %s42
      %s81 = sor.u32 %s79, %s80
      %p82 = scmp.eq.s32.totalorder %s81, 0
      %s84 = sadd.s32 %s83, 1
      %s85 = scalar_select %p82, %s83, %s84
      %p88 = pneg %p82
      %p89 = scmp.eq.s32.totalorder %s24, 7
      %p90 = por %p88, %p89
      %p91 = scmp.ne.s32.totalorder %s83, %s86
      %p92 = scmp.eq.s32.totalorder %s24, 0
      %p93 = por %p91, %p92
      %p94 = scmp.ne.s32.totalorder %s83, %s86
      %p95 = scmp.eq.s32.totalorder %s29, 7
      %p96 = por %p94, %p95
      %p97 = scmp.ne.s32.totalorder %s86, %s87
      %p98 = scmp.eq.s32.totalorder %s29, 0
      %p99 = por %p97, %p98
      %p100 = scmp.ne.s32.totalorder %s86, %s87
      %p101 = scmp.eq.s32.totalorder %s30, 7
      %p102 = por %p100, %p101
      %p104 = scmp.ne.s32.totalorder %s87, %s103
      %p105 = scmp.eq.s32.totalorder %s30, 0
      %p106 = por %p104, %p105
      %s108 = sadd.s32 %s107, 1
      %p111 = scmp.eq.s32.totalorder %s24, 7
      %p112 = scmp.ne.s32.totalorder %s107, %s109
      %p113 = scmp.eq.s32.totalorder %s24, 0
      %p114 = por %p112, %p113
      %p115 = scmp.ne.s32.totalorder %s107, %s109
      %p116 = scmp.eq.s32.totalorder %s29, 7
      %p117 = por %p115, %p116
      %p118 = scmp.ne.s32.totalorder %s109, %s110
      %p119 = scmp.eq.s32.totalorder %s29, 0
      %p120 = por %p118, %p119
      %p121 = scmp.ne.s32.totalorder %s109, %s110
      %p122 = scmp.eq.s32.totalorder %s30, 7
      %p123 = por %p121, %p122
      %p125 = scmp.ne.s32.totalorder %s110, %s124
      %p126 = scmp.eq.s32.totalorder %s30, 0
      %p127 = por %p125, %p126
      %s129 = sadd.s32 %s128, 1
      %p132 = scmp.eq.s32.totalorder %s24, 7
      %p133 = scmp.ne.s32.totalorder %s128, %s130
      %p134 = scmp.eq.s32.totalorder %s24, 0
      %p135 = por %p133, %p134
      %p136 = scmp.ne.s32.totalorder %s128, %s130
      %p137 = scmp.eq.s32.totalorder %s29, 7
      %p138 = por %p136, %p137
      %p139 = scmp.ne.s32.totalorder %s130, %s131
      %p140 = scmp.eq.s32.totalorder %s29, 0
      %p141 = por %p139, %p140
      %p142 = scmp.ne.s32.totalorder %s130, %s131
      %p143 = scmp.eq.s32.totalorder %s30, 7
      %p144 = por %p142, %p143
      %p146 = scmp.ne.s32.totalorder %s131, %s145
      %p147 = scmp.eq.s32.totalorder %s30, 0
      %p148 = por %p146, %p147
      %s150 = sadd.s32 %s149, 1
      %p153 = scmp.eq.s32.totalorder %s24, 7
      %p154 = scmp.ne.s32.totalorder %s149, %s151
      %p155 = scmp.eq.s32.totalorder %s24, 0
      %p156 = por %p154, %p155
      %p157 = scmp.ne.s32.totalorder %s149, %s151
      %p158 = scmp.eq.s32.totalorder %s29, 7
      %p159 = por %p157, %p158
      %p160 = scmp.ne.s32.totalorder %s151, %s152
      %p161 = scmp.eq.s32.totalorder %s29, 0
      %p162 = por %p160, %p161
      %p163 = scmp.ne.s32.totalorder %s151, %s152
      %p164 = scmp.eq.s32.totalorder %s30, 7
      %p165 = por %p163, %p164
      %p167 = scmp.ne.s32.totalorder %s152, %s166
      %p168 = scmp.eq.s32.totalorder %s30, 0
      %p169 = por %p167, %p168
      %s171 = sadd.s32 %s170, 1
      %p174 = scmp.eq.s32.totalorder %s24, 7
      %p175 = scmp.ne.s32.totalorder %s170, %s172
      %p176 = scmp.eq.s32.totalorder %s24, 0
      %p177 = por %p175, %p176
      %p178 = scmp.ne.s32.totalorder %s170, %s172
      %p179 = scmp.eq.s32.totalorder %s29, 7
      %p180 = por %p178, %p179
      %p181 = scmp.ne.s32.totalorder %s172, %s173
      %p182 = scmp.eq.s32.totalorder %s29, 0
      %p183 = por %p181, %p182
      %p184 = scmp.ne.s32.totalorder %s172, %s173
      %p185 = scmp.eq.s32.totalorder %s30, 7
      %p186 = por %p184, %p185
      %p188 = scmp.ne.s32.totalorder %s173, %s187
      %p189 = scmp.eq.s32.totalorder %s30, 0
      %p190 = por %p188, %p189
      %s192 = sadd.s32 %s191, 1
      %p195 = scmp.eq.s32.totalorder %s24, 7
      %p196 = scmp.ne.s32.totalorder %s191, %s193
      %p197 = scmp.eq.s32.totalorder %s24, 0
      %p198 = por %p196, %p197
      %p199 = scmp.ne.s32.totalorder %s191, %s193
      %p200 = scmp.eq.s32.totalorder %s29, 7
      %p201 = por %p199, %p200
      %p202 = scmp.ne.s32.totalorder %s193, %s194
      %p203 = scmp.eq.s32.totalorder %s29, 0
      %p204 = por %p202, %p203
      %p205 = scmp.ne.s32.totalorder %s193, %s194
      %p206 = scmp.eq.s32.totalorder %s30, 7
      %p207 = por %p205, %p206
      %p209 = scmp.ne.s32.totalorder %s194, %s208
      %p210 = scmp.eq.s32.totalorder %s30, 0
      %p211 = por %p209, %p210
      %s212 = ssub.s32 %s31, %s50
      %s213 = ssub.s32 %s32, %s46
      %s214 = sor.u32 %s212, %s213
      %p215 = scmp.eq.s32.totalorder %s214, 0
      %s217 = sadd.s32 %s216, 1
      %s218 = scalar_select %p215, %s216, %s217
      %p221 = pneg %p215
      %p222 = scmp.eq.s32.totalorder %s24, 7
      %p223 = por %p221, %p222
      %p224 = scmp.ne.s32.totalorder %s216, %s219
      %p225 = scmp.eq.s32.totalorder %s24, 0
      %p226 = por %p224, %p225
      %p227 = scmp.ne.s32.totalorder %s216, %s219
      %p228 = scmp.eq.s32.totalorder %s29, 7
      %p229 = por %p227, %p228
      %p230 = scmp.ne.s32.totalorder %s219, %s220
      %p231 = scmp.eq.s32.totalorder %s29, 0
      %p232 = por %p230, %p231
      %p233 = scmp.ne.s32.totalorder %s219, %s220
      %p234 = scmp.eq.s32.totalorder %s30, 7
      %p235 = por %p233, %p234
      %p237 = scmp.ne.s32.totalorder %s220, %s236
      %p238 = scmp.eq.s32.totalorder %s30, 0
      %p239 = por %p237, %p238
      %p240 = scmp.le.s32.totalorder 1, %s24
      %p241 = scmp.lt.s32.totalorder %s24, 9
      %p242 = pnand %p240, %p241
      %p243 = pneg %p242
      // Predicated region
      $region9: #{tpu_custom_call.1} parent=5 // pred_check
        _
      $region10: #{tpu_custom_call.1} parent=5 // pred_check_branch
        %245 = sbr.rel (%p242) target = $region12
      $region11: #{tpu_custom_call.1} parent=5 // pred_region
        %s246 = ssub.s32 %s24, 1
        // Predicated region
        $region13: #{tpu_custom_call.1} parent=11 // pred_check
          %p247 = pneg %p120
        $region14: #{tpu_custom_call.1} parent=11 // pred_check_branch
          %249 = sbr.rel (%p247) target = $region16
        $region15: #{tpu_custom_call.1} parent=11 // pred_region
          %251 = vsyncadd [#allocation12], 0
          %s252 = sshll.u32 %s2, 4
          %s253 = int_to_ptr.hbm [resolvable:$true] %s252
          %s254 = sshll.u32 [#allocation13], 4
          %s255 = int_to_ptr.vmem [resolvable:$true] %s254
          %260 = dma.hbm_to_vmem [thread:$0]  %s253, 2048, %s255, [#allocation12], 128, 128, 8
        $region16: #{tpu_custom_call.1} parent=11 // pred_fallthru
          _
        // Predicated region
        $region17: #{tpu_custom_call.1} parent=11 // pred_check
          %p261 = pneg %p141
        $region18: #{tpu_custom_call.1} parent=11 // pred_check_branch
          %263 = sbr.rel (%p261) target = $region20
        $region19: #{tpu_custom_call.1} parent=11 // pred_region
          %265 = vsyncadd [#allocation15], 0
          %s266 = sshll.u32 %s3, 4
          %s267 = int_to_ptr.hbm [resolvable:$true] %s266
          %s268 = sshll.u32 [#allocation14], 4
          %s269 = int_to_ptr.vmem [resolvable:$true] %s268
          %274 = dma.hbm_to_vmem [thread:$0]  %s267, 2048, %s269, [#allocation15], 128, 128, 8
        $region20: #{tpu_custom_call.1} parent=11 // pred_fallthru
          _
        // Predicated region
        $region21: #{tpu_custom_call.1} parent=11 // pred_check
          %p275 = pneg %p162
        $region22: #{tpu_custom_call.1} parent=11 // pred_check_branch
          %277 = sbr.rel (%p275) target = $region24
        $region23: #{tpu_custom_call.1} parent=11 // pred_region
          %279 = vsyncadd [#allocation15], 0
          %s280 = sshll.u32 %s4, 4
          %s281 = int_to_ptr.hbm [resolvable:$true] %s280
          %s282 = sshll.u32 [#allocation16], 4
          %s283 = int_to_ptr.vmem [resolvable:$true] %s282
          %288 = dma.hbm_to_vmem [thread:$0]  %s281, 2048, %s283, [#allocation15], 128, 128, 8
        $region24: #{tpu_custom_call.1} parent=11 // pred_fallthru
          _
        // Predicated region
        $region25: #{tpu_custom_call.1} parent=11 // pred_check
          %p289 = pneg %p183
        $region26: #{tpu_custom_call.1} parent=11 // pred_check_branch
          %291 = sbr.rel (%p289) target = $region28
        $region27: #{tpu_custom_call.1} parent=11 // pred_region
          %293 = vsyncadd [#allocation18], 0
          %s294 = sshll.u32 %s5, 4
          %s295 = int_to_ptr.hbm [resolvable:$true] %s294
          %s296 = sshll.u32 [#allocation17], 4
          %s297 = int_to_ptr.vmem [resolvable:$true] %s296
          %302 = dma.hbm_to_vmem [thread:$0]  %s295, 2048, %s297, [#allocation18], 128, 128, 8
        $region28: #{tpu_custom_call.1} parent=11 // pred_fallthru
          _
        // Predicated region
        $region29: #{tpu_custom_call.1} parent=11 // pred_check
          %p303 = pneg %p204
        $region30: #{tpu_custom_call.1} parent=11 // pred_check_branch
          %305 = sbr.rel (%p303) target = $region32
        $region31: #{tpu_custom_call.1} parent=11 // pred_region
          _
        $region32: #{tpu_custom_call.1} parent=11 // pred_fallthru
          _
      $region12: #{tpu_custom_call.1} parent=5 // pred_fallthru
        _
      %p306 = scmp.lt.s32.totalorder %s24, 8
      // Predicated region
      $region33: #{tpu_custom_call.1} parent=5 // pred_check
        %p307 = pneg %p306
      $region34: #{tpu_custom_call.1} parent=5 // pred_check_branch
        %309 = sbr.rel (%p307) target = $region36
      $region35: #{tpu_custom_call.1} parent=5 // pred_region
        // Predicated region
        $region37: #{tpu_custom_call.1} parent=35 // pred_check
          %p310 = pneg %p65
        $region38: #{tpu_custom_call.1} parent=35 // pred_check_branch
          %312 = sbr.rel (%p310) target = $region40
        $region39: #{tpu_custom_call.1} parent=35 // pred_region
          %s313 = sand.u32 %s55, 1
          %s314 = scalar_lea.sflag [#allocation9], %s313
          %s315 = sand.u32 %s55, 1
          %s316 = smul.addr %s315, 64
          %s317 = scalar_lea.vmem [#allocation8], %s316
          %s318 = smul.u32 8, %s32
          %320 = vsyncadd %s314, 0
          %s321 = smul.addr %s31, 16
          %s322 = sadd.s32 %s318, %s321
          %s323 = smul.addr %s322, 8
          %s324 = scalar_lea.hbm %s0, %s323
          %s325 = sshll.u32 %s324, 4
          %s326 = int_to_ptr.hbm [resolvable:$true] %s325
          %s327 = sshll.u32 %s317, 4
          %s328 = int_to_ptr.vmem [resolvable:$true] %s327
          %333 = dma.hbm_to_vmem [thread:$0]  %s326, 1024, %s328, %s314, 128, 128, 8
        $region40: #{tpu_custom_call.1} parent=35 // pred_fallthru
          _
        // Predicated region
        $region41: #{tpu_custom_call.1} parent=35 // pred_check
          %p334 = pneg %p93
        $region42: #{tpu_custom_call.1} parent=35 // pred_check_branch
          %336 = sbr.rel (%p334) target = $region44
        $region43: #{tpu_custom_call.1} parent=35 // pred_region
          %s337 = sand.u32 %s24, 1
          %s338 = scalar_lea.sflag [#allocation12], %s337
          %s339 = sand.u32 %s83, 1
          %s340 = smul.addr %s339, 64
          %s341 = scalar_lea.vmem [#allocation11], %s340
          %s342 = smul.u32 8, %s33
          %344 = vsyncadd %s338, 0
          %s345 = smul.addr %s31, 16
          %s346 = sadd.s32 %s342, %s345
          %s347 = smul.addr %s346, 8
          %s348 = scalar_lea.hbm %s1, %s347
          %s349 = sshll.u32 %s348, 4
          %s350 = int_to_ptr.hbm [resolvable:$true] %s349
          %s351 = sshll.u32 %s341, 4
          %s352 = int_to_ptr.vmem [resolvable:$true] %s351
          %357 = dma.hbm_to_vmem [thread:$0]  %s350, 1024, %s352, %s338, 128, 128, 8
        $region44: #{tpu_custom_call.1} parent=35 // pred_fallthru
          _
      $region36: #{tpu_custom_call.1} parent=5 // pred_fallthru
        _
      %p358 = scmp.le.s32.totalorder 1, %s24
      %p359 = scmp.lt.s32.totalorder %s24, 9
      %p360 = pnand %p358, %p359
      %p361 = pneg %p360
      // Predicated region
      $region45: #{tpu_custom_call.1} parent=5 // pred_check
        _
      $region46: #{tpu_custom_call.1} parent=5 // pred_check_branch
        %363 = sbr.rel (%p360) target = $region48
      $region47: #{tpu_custom_call.1} parent=5 // pred_region
        %s364 = ssub.s32 %s24, 1
        %s365 = sand.u32 %s58, 1
        %s366 = scalar_lea.sflag [#allocation9], %s365
        %s367 = sand.u32 %s58, 1
        %s368 = smul.addr %s367, 64
        %s369 = scalar_lea.vmem [#allocation8], %s368
        // Predicated region
        $region49: #{tpu_custom_call.1} parent=47 // pred_check
          %p370 = pneg %p71
        $region50: #{tpu_custom_call.1} parent=47 // pred_check_branch
          %372 = sbr.rel (%p370) target = $region52
        $region51: #{tpu_custom_call.1} parent=47 // pred_region
          %374 = dma.done %s366, 1024
        $region52: #{tpu_custom_call.1} parent=47 // pred_fallthru
          _
        %s375 = sand.u32 %s29, 1
        %s376 = scalar_lea.sflag [#allocation12], %s375
        %s377 = sand.u32 %s86, 1
        %s378 = smul.addr %s377, 64
        %s379 = scalar_lea.vmem [#allocation11], %s378
        // Predicated region
        $region53: #{tpu_custom_call.1} parent=47 // pred_check
          %p380 = pneg %p99
        $region54: #{tpu_custom_call.1} parent=47 // pred_check_branch
          %382 = sbr.rel (%p380) target = $region56
        $region55: #{tpu_custom_call.1} parent=47 // pred_region
          %384 = dma.done %s376, 1024
        $region56: #{tpu_custom_call.1} parent=47 // pred_fallthru
          _
        // Predicated region
        $region57: #{tpu_custom_call.1} parent=47 // pred_check
          %p385 = pneg %p120
        $region58: #{tpu_custom_call.1} parent=47 // pred_check_branch
          %387 = sbr.rel (%p385) target = $region60
        $region59: #{tpu_custom_call.1} parent=47 // pred_region
          %389 = dma.done [#allocation12], 2048
        $region60: #{tpu_custom_call.1} parent=47 // pred_fallthru
          _
        // Predicated region
        $region61: #{tpu_custom_call.1} parent=47 // pred_check
          %p390 = pneg %p141
        $region62: #{tpu_custom_call.1} parent=47 // pred_check_branch
          %392 = sbr.rel (%p390) target = $region64
        $region63: #{tpu_custom_call.1} parent=47 // pred_region
          %394 = dma.done [#allocation15], 2048
        $region64: #{tpu_custom_call.1} parent=47 // pred_fallthru
          _
        // Predicated region
        $region65: #{tpu_custom_call.1} parent=47 // pred_check
          %p395 = pneg %p162
        $region66: #{tpu_custom_call.1} parent=47 // pred_check_branch
          %397 = sbr.rel (%p395) target = $region68
        $region67: #{tpu_custom_call.1} parent=47 // pred_region
          %399 = dma.done [#allocation15], 2048
        $region68: #{tpu_custom_call.1} parent=47 // pred_fallthru
          _
        // Predicated region
        $region69: #{tpu_custom_call.1} parent=47 // pred_check
          %p400 = pneg %p183
        $region70: #{tpu_custom_call.1} parent=47 // pred_check_branch
          %402 = sbr.rel (%p400) target = $region72
        $region71: #{tpu_custom_call.1} parent=47 // pred_region
          %404 = dma.done [#allocation18], 2048
        $region72: #{tpu_custom_call.1} parent=47 // pred_fallthru
          _
        %s405 = sand.u32 %s58, 1
        %s406 = scalar_lea.sflag [#allocation9], %s405
        %s407 = sand.u32 %s58, 1
        %s408 = smul.addr %s407, 64
        %s409 = scalar_lea.vmem [#allocation8], %s408
        %p410 = pneg %p71
        %p411 = pneg %p68
        %s412 = sand.u32 %s29, 1
        %s413 = scalar_lea.sflag [#allocation12], %s412
        %s414 = sand.u32 %s86, 1
        %s415 = smul.addr %s414, 64
        %s416 = scalar_lea.vmem [#allocation11], %s415
        %p417 = pneg %p99
        %p418 = pneg %p96
        %p419 = pneg %p120
        %p420 = pneg %p117
        %p421 = pneg %p141
        %p422 = pneg %p138
        %p423 = pneg %p162
        %p424 = pneg %p159
        %p425 = pneg %p183
        %p426 = pneg %p180
        %p427 = pneg %p204
        %p428 = pneg %p201
        %p429 = pneg %p232
        %p430 = pneg %p229
        %s431 = sand.u32 %s219, 1
        %s432 = scalar_lea.sflag [#allocation10], %s431
        %s433 = sand.u32 %s219, 1
        %s434 = smul.addr %s433, 64
        %s435 = scalar_lea.vmem [#allocation19], %s434
        %s436 = smul.u32 8, %s35
        %s437 = smul.u32 8, %s36
        %s438 = smul.u32 8, %s35
        %p439 = scmp.eq.s32.totalorder %s36, 0
        // Predicated region
        $region73: #{tpu_custom_call.1} parent=47 // pred_check
          %p440 = pneg %p439
        $region74: #{tpu_custom_call.1} parent=47 // pred_check_branch
          %442 = sbr.rel (%p440) target = $region76
        $region75: #{tpu_custom_call.1} parent=47 // pred_region
          %v443 = vld [vmem:[%s369] sm:$0xff]
          %v444 = vld [vmem:[%s369 + $0x8] sm:$0xff]
          %v445 = vld [vmem:[%s369 + $0x10] sm:$0xff]
          %v446 = vld [vmem:[%s369 + $0x18] sm:$0xff]
          %v447 = vld [vmem:[%s369 + $0x20] sm:$0xff]
          %v448 = vld [vmem:[%s369 + $0x28] sm:$0xff]
          %v449 = vld [vmem:[%s369 + $0x30] sm:$0xff]
          %v450 = vld [vmem:[%s369 + $0x38] sm:$0xff]
          %v451 = vld [vmem:[#allocation13] sm:$0xff]
          %v452 = vld [vmem:[#allocation13 + $0x8] sm:$0xff]
          %v453 = vld [vmem:[#allocation13 + $0x10] sm:$0xff]
          %v454 = vld [vmem:[#allocation13 + $0x18] sm:$0xff]
          %v455 = vld [vmem:[#allocation13 + $0x20] sm:$0xff]
          %v456 = vld [vmem:[#allocation13 + $0x28] sm:$0xff]
          %v457 = vld [vmem:[#allocation13 + $0x30] sm:$0xff]
          %v458 = vld [vmem:[#allocation13 + $0x38] sm:$0xff]
          %v459 = vld [vmem:[#allocation13 + $0x40] sm:$0xff]
          %v460 = vld [vmem:[#allocation13 + $0x48] sm:$0xff]
          %v461 = vld [vmem:[#allocation13 + $0x50] sm:$0xff]
          %v462 = vld [vmem:[#allocation13 + $0x58] sm:$0xff]
          %v463 = vld [vmem:[#allocation13 + $0x60] sm:$0xff]
          %v464 = vld [vmem:[#allocation13 + $0x68] sm:$0xff]
          %v465 = vld [vmem:[#allocation13 + $0x70] sm:$0xff]
          %v466 = vld [vmem:[#allocation13 + $0x78] sm:$0xff]
          %467 = vmatpush.msra.mxu0 %v466
          %468 = vmatpush.msra.mxu0 %v465
          %469 = vmatpush.msra.mxu0 %v464
          %470 = vmatpush.msra.mxu0 %v463
          %471 = vmatpush.msra.mxu0 %v462
          %472 = vmatpush.msra.mxu0 %v461
          %473 = vmatpush.msra.mxu0 %v460
          %474 = vmatpush.msra.mxu0 %v459
          %475 = vmatpush.msra.mxu0 %v458
          %476 = vmatpush.msra.mxu0 %v457
          %477 = vmatpush.msra.mxu0 %v456
          %478 = vmatpush.msra.mxu0 %v455
          %479 = vmatpush.msra.mxu0 %v454
          %480 = vmatpush.msra.mxu0 %v453
          %481 = vmatpush.msra.mxu0 %v452
          %482 = vmatpush.msra.mxu0 %v451
          %483 = vmatmul.f32.gmra.mxu0 %v443
          %v484 = vpop.f32.mrf.mxu0
          %v485 = vadd.f32 0.0, %v484
          %486 = vmatmul.f32.gmra.mxu0 %v444
          %v487 = vpop.f32.mrf.mxu0
          %v488 = vadd.f32 0.0, %v487
          %489 = vmatmul.f32.gmra.mxu0 %v445
          %v490 = vpop.f32.mrf.mxu0
          %v491 = vadd.f32 0.0, %v490
          %492 = vmatmul.f32.gmra.mxu0 %v446
          %v493 = vpop.f32.mrf.mxu0
          %v494 = vadd.f32 0.0, %v493
          %495 = vmatmul.f32.gmra.mxu0 %v447
          %v496 = vpop.f32.mrf.mxu0
          %v497 = vadd.f32 0.0, %v496
          %498 = vmatmul.f32.gmra.mxu0 %v448
          %v499 = vpop.f32.mrf.mxu0
          %v500 = vadd.f32 0.0, %v499
          %501 = vmatmul.f32.gmra.mxu0 %v449
          %v502 = vpop.f32.mrf.mxu0
          %v503 = vadd.f32 0.0, %v502
          %504 = vmatmul.f32.gmra.mxu0 %v450
          %v505 = vpop.f32.mrf.mxu0
          %v506 = vadd.f32 0.0, %v505
          %507 = vdwg.mxu0
          %508 = vst [vmem:[#allocation2] sm:$0xff] %v485
          %509 = vst [vmem:[#allocation2 + $0x8] sm:$0xff] %v488
          %510 = vst [vmem:[#allocation2 + $0x10] sm:$0xff] %v491
          %511 = vst [vmem:[#allocation2 + $0x18] sm:$0xff] %v494
          %512 = vst [vmem:[#allocation2 + $0x20] sm:$0xff] %v497
          %513 = vst [vmem:[#allocation2 + $0x28] sm:$0xff] %v500
          %514 = vst [vmem:[#allocation2 + $0x30] sm:$0xff] %v503
          %515 = vst [vmem:[#allocation2 + $0x38] sm:$0xff] %v506
          %516 = vst [vmem:[#allocation3] sm:$0xff] 0.0
          %517 = vst [vmem:[#allocation3 + $0x8] sm:$0xff] 0.0
          %518 = vst [vmem:[#allocation3 + $0x10] sm:$0xff] 0.0
          %519 = vst [vmem:[#allocation3 + $0x18] sm:$0xff] 0.0
          %520 = vst [vmem:[#allocation3 + $0x20] sm:$0xff] 0.0
          %521 = vst [vmem:[#allocation3 + $0x28] sm:$0xff] 0.0
          %522 = vst [vmem:[#allocation3 + $0x30] sm:$0xff] 0.0
          %523 = vst [vmem:[#allocation3 + $0x38] sm:$0xff] 0.0
          %vm524 = vcmask 7168
          %525 = vst.msk [vmem:[#allocation4] sm:$0xff] %vm524, -inf
          %526 = vst.msk [vmem:[#allocation4 + $0x8] sm:$0xff] %vm524, -inf
          %527 = vst.msk [vmem:[#allocation4 + $0x10] sm:$0xff] %vm524, -inf
          %528 = vst.msk [vmem:[#allocation4 + $0x18] sm:$0xff] %vm524, -inf
          %529 = vst.msk [vmem:[#allocation4 + $0x20] sm:$0xff] %vm524, -inf
          %530 = vst.msk [vmem:[#allocation4 + $0x28] sm:$0xff] %vm524, -inf
          %531 = vst.msk [vmem:[#allocation4 + $0x30] sm:$0xff] %vm524, -inf
          %532 = vst.msk [vmem:[#allocation4 + $0x38] sm:$0xff] %vm524, -inf
          %533 = vst.msk [vmem:[#allocation6] sm:$0xff] %vm524, 0.0
          %534 = vst.msk [vmem:[#allocation6 + $0x8] sm:$0xff] %vm524, 0.0
          %535 = vst.msk [vmem:[#allocation6 + $0x10] sm:$0xff] %vm524, 0.0
          %536 = vst.msk [vmem:[#allocation6 + $0x18] sm:$0xff] %vm524, 0.0
          %537 = vst.msk [vmem:[#allocation6 + $0x20] sm:$0xff] %vm524, 0.0
          %538 = vst.msk [vmem:[#allocation6 + $0x28] sm:$0xff] %vm524, 0.0
          %539 = vst.msk [vmem:[#allocation6 + $0x30] sm:$0xff] %vm524, 0.0
          %540 = vst.msk [vmem:[#allocation6 + $0x38] sm:$0xff] %vm524, 0.0
          %541 = vst.msk [vmem:[#allocation5] sm:$0xff] %vm524, -inf
          %542 = vst.msk [vmem:[#allocation5 + $0x8] sm:$0xff] %vm524, -inf
          %543 = vst.msk [vmem:[#allocation5 + $0x10] sm:$0xff] %vm524, -inf
          %544 = vst.msk [vmem:[#allocation5 + $0x18] sm:$0xff] %vm524, -inf
          %545 = vst.msk [vmem:[#allocation5 + $0x20] sm:$0xff] %vm524, -inf
          %546 = vst.msk [vmem:[#allocation5 + $0x28] sm:$0xff] %vm524, -inf
          %547 = vst.msk [vmem:[#allocation5 + $0x30] sm:$0xff] %vm524, -inf
          %548 = vst.msk [vmem:[#allocation5 + $0x38] sm:$0xff] %vm524, -inf
          %549 = vst.msk [vmem:[#allocation7] sm:$0xff] %vm524, 0.0
          %550 = vst.msk [vmem:[#allocation7 + $0x8] sm:$0xff] %vm524, 0.0
          %551 = vst.msk [vmem:[#allocation7 + $0x10] sm:$0xff] %vm524, 0.0
          %552 = vst.msk [vmem:[#allocation7 + $0x18] sm:$0xff] %vm524, 0.0
          %553 = vst.msk [vmem:[#allocation7 + $0x20] sm:$0xff] %vm524, 0.0
          %554 = vst.msk [vmem:[#allocation7 + $0x28] sm:$0xff] %vm524, 0.0
          %555 = vst.msk [vmem:[#allocation7 + $0x30] sm:$0xff] %vm524, 0.0
          %556 = vst.msk [vmem:[#allocation7 + $0x38] sm:$0xff] %vm524, 0.0
        $region76: #{tpu_custom_call.1} parent=47 // pred_fallthru
          _
        %v557 = vld [vmem:[%s379] sm:$0xff]
        %v558 = vld [vmem:[%s379 + $0x8] sm:$0xff]
        %v559 = vld [vmem:[%s379 + $0x10] sm:$0xff]
        %v560 = vld [vmem:[%s379 + $0x18] sm:$0xff]
        %v561 = vld [vmem:[%s379 + $0x20] sm:$0xff]
        %v562 = vld [vmem:[%s379 + $0x28] sm:$0xff]
        %v563 = vld [vmem:[%s379 + $0x30] sm:$0xff]
        %v564 = vld [vmem:[%s379 + $0x38] sm:$0xff]
        %v565 = vld [vmem:[#allocation14] sm:$0xff]
        %v566 = vld [vmem:[#allocation14 + $0x8] sm:$0xff]
        %v567 = vld [vmem:[#allocation14 + $0x10] sm:$0xff]
        %v568 = vld [vmem:[#allocation14 + $0x18] sm:$0xff]
        %v569 = vld [vmem:[#allocation14 + $0x20] sm:$0xff]
        %v570 = vld [vmem:[#allocation14 + $0x28] sm:$0xff]
        %v571 = vld [vmem:[#allocation14 + $0x30] sm:$0xff]
        %v572 = vld [vmem:[#allocation14 + $0x38] sm:$0xff]
        %v573 = vld [vmem:[#allocation14 + $0x40] sm:$0xff]
        %v574 = vld [vmem:[#allocation14 + $0x48] sm:$0xff]
        %v575 = vld [vmem:[#allocation14 + $0x50] sm:$0xff]
        %v576 = vld [vmem:[#allocation14 + $0x58] sm:$0xff]
        %v577 = vld [vmem:[#allocation14 + $0x60] sm:$0xff]
        %v578 = vld [vmem:[#allocation14 + $0x68] sm:$0xff]
        %v579 = vld [vmem:[#allocation14 + $0x70] sm:$0xff]
        %v580 = vld [vmem:[#allocation14 + $0x78] sm:$0xff]
        %581 = vmatpush.msra.mxu0 %v580
        %582 = vmatpush.msra.mxu0 %v579
        %583 = vmatpush.msra.mxu0 %v578
        %584 = vmatpush.msra.mxu0 %v577
        %585 = vmatpush.msra.mxu0 %v576
        %586 = vmatpush.msra.mxu0 %v575
        %587 = vmatpush.msra.mxu0 %v574
        %588 = vmatpush.msra.mxu0 %v573
        %589 = vmatpush.msra.mxu0 %v572
        %590 = vmatpush.msra.mxu0 %v571
        %591 = vmatpush.msra.mxu0 %v570
        %592 = vmatpush.msra.mxu0 %v569
        %593 = vmatpush.msra.mxu0 %v568
        %594 = vmatpush.msra.mxu0 %v567
        %595 = vmatpush.msra.mxu0 %v566
        %596 = vmatpush.msra.mxu0 %v565
        %597 = vmatmul.f32.gmra.mxu0 %v557
        %v598 = vpop.f32.mrf.mxu0
        %v599 = vadd.f32 0.0, %v598
        %600 = vmatmul.f32.gmra.mxu0 %v558
        %v601 = vpop.f32.mrf.mxu0
        %v602 = vadd.f32 0.0, %v601
        %603 = vmatmul.f32.gmra.mxu0 %v559
        %v604 = vpop.f32.mrf.mxu0
        %v605 = vadd.f32 0.0, %v604
        %606 = vmatmul.f32.gmra.mxu0 %v560
        %v607 = vpop.f32.mrf.mxu0
        %v608 = vadd.f32 0.0, %v607
        %609 = vmatmul.f32.gmra.mxu0 %v561
        %v610 = vpop.f32.mrf.mxu0
        %v611 = vadd.f32 0.0, %v610
        %612 = vmatmul.f32.gmra.mxu0 %v562
        %v613 = vpop.f32.mrf.mxu0
        %v614 = vadd.f32 0.0, %v613
        %615 = vmatmul.f32.gmra.mxu0 %v563
        %v616 = vpop.f32.mrf.mxu0
        %v617 = vadd.f32 0.0, %v616
        %618 = vmatmul.f32.gmra.mxu0 %v564
        %v619 = vpop.f32.mrf.mxu0
        %v620 = vadd.f32 0.0, %v619
        %621 = vdwg.mxu0
        %v622 = vld [vmem:[#allocation16] sm:$0xff]
        %v623 = vld [vmem:[#allocation16 + $0x8] sm:$0xff]
        %v624 = vld [vmem:[#allocation16 + $0x10] sm:$0xff]
        %v625 = vld [vmem:[#allocation16 + $0x18] sm:$0xff]
        %v626 = vld [vmem:[#allocation16 + $0x20] sm:$0xff]
        %v627 = vld [vmem:[#allocation16 + $0x28] sm:$0xff]
        %v628 = vld [vmem:[#allocation16 + $0x30] sm:$0xff]
        %v629 = vld [vmem:[#allocation16 + $0x38] sm:$0xff]
        %v630 = vld [vmem:[#allocation16 + $0x40] sm:$0xff]
        %v631 = vld [vmem:[#allocation16 + $0x48] sm:$0xff]
        %v632 = vld [vmem:[#allocation16 + $0x50] sm:$0xff]
        %v633 = vld [vmem:[#allocation16 + $0x58] sm:$0xff]
        %v634 = vld [vmem:[#allocation16 + $0x60] sm:$0xff]
        %v635 = vld [vmem:[#allocation16 + $0x68] sm:$0xff]
        %v636 = vld [vmem:[#allocation16 + $0x70] sm:$0xff]
        %v637 = vld [vmem:[#allocation16 + $0x78] sm:$0xff]
        %638 = vmatpush.msra.mxu0 %v637
        %639 = vmatpush.msra.mxu0 %v636
        %640 = vmatpush.msra.mxu0 %v635
        %641 = vmatpush.msra.mxu0 %v634
        %642 = vmatpush.msra.mxu0 %v633
        %643 = vmatpush.msra.mxu0 %v632
        %644 = vmatpush.msra.mxu0 %v631
        %645 = vmatpush.msra.mxu0 %v630
        %646 = vmatpush.msra.mxu0 %v629
        %647 = vmatpush.msra.mxu0 %v628
        %648 = vmatpush.msra.mxu0 %v627
        %649 = vmatpush.msra.mxu0 %v626
        %650 = vmatpush.msra.mxu0 %v625
        %651 = vmatpush.msra.mxu0 %v624
        %652 = vmatpush.msra.mxu0 %v623
        %653 = vmatpush.msra.mxu0 %v622
        %654 = vmatmul.f32.gmra.mxu0 %v557
        %v655 = vpop.f32.mrf.mxu0
        %v656 = vadd.f32 0.0, %v655
        %657 = vmatmul.f32.gmra.mxu0 %v558
        %v658 = vpop.f32.mrf.mxu0
        %v659 = vadd.f32 0.0, %v658
        %660 = vmatmul.f32.gmra.mxu0 %v559
        %v661 = vpop.f32.mrf.mxu0
        %v662 = vadd.f32 0.0, %v661
        %663 = vmatmul.f32.gmra.mxu0 %v560
        %v664 = vpop.f32.mrf.mxu0
        %v665 = vadd.f32 0.0, %v664
        %666 = vmatmul.f32.gmra.mxu0 %v561
        %v667 = vpop.f32.mrf.mxu0
        %v668 = vadd.f32 0.0, %v667
        %669 = vmatmul.f32.gmra.mxu0 %v562
        %v670 = vpop.f32.mrf.mxu0
        %v671 = vadd.f32 0.0, %v670
        %672 = vmatmul.f32.gmra.mxu0 %v563
        %v673 = vpop.f32.mrf.mxu0
        %v674 = vadd.f32 0.0, %v673
        %675 = vmatmul.f32.gmra.mxu0 %v564
        %v676 = vpop.f32.mrf.mxu0
        %v677 = vadd.f32 0.0, %v676
        %678 = vdwg.mxu0
        %v679 = vld [vmem:[#allocation2] sm:$0xff]
        %v680 = vld [vmem:[#allocation2 + $0x8] sm:$0xff]
        %v681 = vld [vmem:[#allocation2 + $0x10] sm:$0xff]
        %v682 = vld [vmem:[#allocation2 + $0x18] sm:$0xff]
        %v683 = vld [vmem:[#allocation2 + $0x20] sm:$0xff]
        %v684 = vld [vmem:[#allocation2 + $0x28] sm:$0xff]
        %v685 = vld [vmem:[#allocation2 + $0x30] sm:$0xff]
        %v686 = vld [vmem:[#allocation2 + $0x38] sm:$0xff]
        %vm687 = vcmask 523264
        %v689 = vsel %vm687, %v679, 0
        %v692 = vsel %vm687, %v680, 0
        %v695 = vsel %vm687, %v681, 0
        %v698 = vsel %vm687, %v682, 0
        %v701 = vsel %vm687, %v683, 0
        %v704 = vsel %vm687, %v684, 0
        %v707 = vsel %vm687, %v685, 0
        %v710 = vsel %vm687, %v686, 0
        %v713 = vsel %vm687, %v599, 0
        %v716 = vsel %vm687, %v602, 0
        %v719 = vsel %vm687, %v605, 0
        %v722 = vsel %vm687, %v608, 0
        %v725 = vsel %vm687, %v611, 0
        %v728 = vsel %vm687, %v614, 0
        %v731 = vsel %vm687, %v617, 0
        %v734 = vsel %vm687, %v620, 0
        %736 = vmatpush.xpose.msra.mxu0 0.0
        %737 = vmatpush.xpose.msra.mxu0 0.0
        %738 = vmatpush.xpose.msra.mxu0 0.0
        %739 = vmatpush.xpose.msra.mxu0 0.0
        %740 = vmatpush.xpose.msra.mxu0 0.0
        %741 = vmatpush.xpose.msra.mxu0 0.0
        %742 = vmatpush.xpose.msra.mxu0 0.0
        %743 = vmatpush.xpose.msra.mxu0 0.0
        %744 = vmatpush.xpose.msra.mxu0 %v734
        %745 = vmatpush.xpose.msra.mxu0 %v731
        %746 = vmatpush.xpose.msra.mxu0 %v728
        %747 = vmatpush.xpose.msra.mxu0 %v725
        %748 = vmatpush.xpose.msra.mxu0 %v722
        %749 = vmatpush.xpose.msra.mxu0 %v719
        %750 = vmatpush.xpose.msra.mxu0 %v716
        %751 = vmatpush.xpose.msra.mxu0 %v713
        %752 = vmatmul.f32.gmra.mxu0 %v689
        %v753 = vpop.f32.mrf.mxu0
        %v754 = vadd.f32 0.0, %v753
        %755 = vmatmul.f32.gmra.mxu0 %v692
        %v756 = vpop.f32.mrf.mxu0
        %v757 = vadd.f32 0.0, %v756
        %758 = vmatmul.f32.gmra.mxu0 %v695
        %v759 = vpop.f32.mrf.mxu0
        %v760 = vadd.f32 0.0, %v759
        %761 = vmatmul.f32.gmra.mxu0 %v698
        %v762 = vpop.f32.mrf.mxu0
        %v763 = vadd.f32 0.0, %v762
        %764 = vmatmul.f32.gmra.mxu0 %v701
        %v765 = vpop.f32.mrf.mxu0
        %v766 = vadd.f32 0.0, %v765
        %767 = vmatmul.f32.gmra.mxu0 %v704
        %v768 = vpop.f32.mrf.mxu0
        %v769 = vadd.f32 0.0, %v768
        %770 = vmatmul.f32.gmra.mxu0 %v707
        %v771 = vpop.f32.mrf.mxu0
        %v772 = vadd.f32 0.0, %v771
        %773 = vmatmul.f32.gmra.mxu0 %v710
        %v774 = vpop.f32.mrf.mxu0
        %v775 = vadd.f32 0.0, %v774
        %776 = vdwg.mxu0
        %v777 = vld [vmem:[#allocation4] sm:$0xff]
        %v778 = vld [vmem:[#allocation4 + $0x8] sm:$0xff]
        %v779 = vld [vmem:[#allocation4 + $0x10] sm:$0xff]
        %v780 = vld [vmem:[#allocation4 + $0x18] sm:$0xff]
        %v781 = vld [vmem:[#allocation4 + $0x20] sm:$0xff]
        %v782 = vld [vmem:[#allocation4 + $0x28] sm:$0xff]
        %v783 = vld [vmem:[#allocation4 + $0x30] sm:$0xff]
        %v784 = vld [vmem:[#allocation4 + $0x38] sm:$0xff]
        %v785 = vsel %vm687, %v754, -inf
        %786 = vmax.xlane.f32.xlu0 %v785
        %v787 = vpop.xlane.xlu0 %786
        %v788 = vsel %vm687, %v757, -inf
        %789 = vmax.xlane.f32.xlu0 %v788
        %v790 = vpop.xlane.xlu0 %789
        %v791 = vsel %vm687, %v760, -inf
        %792 = vmax.xlane.f32.xlu0 %v791
        %v793 = vpop.xlane.xlu0 %792
        %v794 = vsel %vm687, %v763, -inf
        %795 = vmax.xlane.f32.xlu0 %v794
        %v796 = vpop.xlane.xlu0 %795
        %v797 = vsel %vm687, %v766, -inf
        %798 = vmax.xlane.f32.xlu0 %v797
        %v799 = vpop.xlane.xlu0 %798
        %v800 = vsel %vm687, %v769, -inf
        %801 = vmax.xlane.f32.xlu0 %v800
        %v802 = vpop.xlane.xlu0 %801
        %v803 = vsel %vm687, %v772, -inf
        %804 = vmax.xlane.f32.xlu0 %v803
        %v805 = vpop.xlane.xlu0 %804
        %v806 = vsel %vm687, %v775, -inf
        %807 = vmax.xlane.f32.xlu0 %v806
        %v808 = vpop.xlane.xlu0 %807
        %v809 = vmax.f32 %v777, %v787
        %v810 = vmax.f32 %v778, %v790
        %v811 = vmax.f32 %v779, %v793
        %v812 = vmax.f32 %v780, %v796
        %v813 = vmax.f32 %v781, %v799
        %v814 = vmax.f32 %v782, %v802
        %v815 = vmax.f32 %v783, %v805
        %v816 = vmax.f32 %v784, %v808
        %v817 = vsub.f32 %v777, %v809
        %v818 = vsub.f32 %v778, %v810
        %v819 = vsub.f32 %v779, %v811
        %v820 = vsub.f32 %v780, %v812
        %v821 = vsub.f32 %v781, %v813
        %v822 = vsub.f32 %v782, %v814
        %v823 = vsub.f32 %v783, %v815
        %v824 = vsub.f32 %v784, %v816
        %v825 = vmul.f32 %v817, 1.442695
        %v826 = vpow.pop %v825
        %v827 = vmul.f32 %v818, 1.442695
        %v828 = vpow.pop %v827
        %v829 = vmul.f32 %v819, 1.442695
        %v830 = vpow.pop %v829
        %v831 = vmul.f32 %v820, 1.442695
        %v832 = vpow.pop %v831
        %v833 = vmul.f32 %v821, 1.442695
        %v834 = vpow.pop %v833
        %v835 = vmul.f32 %v822, 1.442695
        %v836 = vpow.pop %v835
        %v837 = vmul.f32 %v823, 1.442695
        %v838 = vpow.pop %v837
        %v839 = vmul.f32 %v824, 1.442695
        %v840 = vpow.pop %v839
        %842 = vset.pattern.permute.xlu0 0
        %843 = vperm.xlu0 %842, %v809
        %v844 = vpop.permute.xlu0 %843
        %847 = vset.pattern.permute.xlu0 0
        %848 = vperm.xlu0 %847, %v810
        %v849 = vpop.permute.xlu0 %848
        %852 = vset.pattern.permute.xlu0 0
        %853 = vperm.xlu0 %852, %v811
        %v854 = vpop.permute.xlu0 %853
        %857 = vset.pattern.permute.xlu0 0
        %858 = vperm.xlu0 %857, %v812
        %v859 = vpop.permute.xlu0 %858
        %862 = vset.pattern.permute.xlu0 0
        %863 = vperm.xlu0 %862, %v813
        %v864 = vpop.permute.xlu0 %863
        %867 = vset.pattern.permute.xlu0 0
        %868 = vperm.xlu0 %867, %v814
        %v869 = vpop.permute.xlu0 %868
        %872 = vset.pattern.permute.xlu0 0
        %873 = vperm.xlu0 %872, %v815
        %v874 = vpop.permute.xlu0 %873
        %877 = vset.pattern.permute.xlu0 0
        %878 = vperm.xlu0 %877, %v816
        %v879 = vpop.permute.xlu0 %878
        %v881 = vsub.f32 %v754, %v844
        %v882 = vsub.f32 %v757, %v849
        %v883 = vsub.f32 %v760, %v854
        %v884 = vsub.f32 %v763, %v859
        %v885 = vsub.f32 %v766, %v864
        %v886 = vsub.f32 %v769, %v869
        %v887 = vsub.f32 %v772, %v874
        %v888 = vsub.f32 %v775, %v879
        %v889 = vmul.f32 %v881, 1.442695
        %v890 = vpow.pop %v889
        %v891 = vmul.f32 %v882, 1.442695
        %v892 = vpow.pop %v891
        %v893 = vmul.f32 %v883, 1.442695
        %v894 = vpow.pop %v893
        %v895 = vmul.f32 %v884, 1.442695
        %v896 = vpow.pop %v895
        %v897 = vmul.f32 %v885, 1.442695
        %v898 = vpow.pop %v897
        %v899 = vmul.f32 %v886, 1.442695
        %v900 = vpow.pop %v899
        %v901 = vmul.f32 %v887, 1.442695
        %v902 = vpow.pop %v901
        %v903 = vmul.f32 %v888, 1.442695
        %v904 = vpow.pop %v903
        %v905 = vld [vmem:[#allocation6] sm:$0xff]
        %v906 = vld [vmem:[#allocation6 + $0x8] sm:$0xff]
        %v907 = vld [vmem:[#allocation6 + $0x10] sm:$0xff]
        %v908 = vld [vmem:[#allocation6 + $0x18] sm:$0xff]
        %v909 = vld [vmem:[#allocation6 + $0x20] sm:$0xff]
        %v910 = vld [vmem:[#allocation6 + $0x28] sm:$0xff]
        %v911 = vld [vmem:[#allocation6 + $0x30] sm:$0xff]
        %v912 = vld [vmem:[#allocation6 + $0x38] sm:$0xff]
        %v913 = vmul.f32 %v826, %v905
        %v914 = vmul.f32 %v828, %v906
        %v915 = vmul.f32 %v830, %v907
        %v916 = vmul.f32 %v832, %v908
        %v917 = vmul.f32 %v834, %v909
        %v918 = vmul.f32 %v836, %v910
        %v919 = vmul.f32 %v838, %v911
        %v920 = vmul.f32 %v840, %v912
        %v921 = vsel %vm687, %v890, 0.0
        %922 = vadd.xlane.f32.xlu0 %v921
        %v923 = vpop.xlane.xlu0 %922
        %v924 = vsel %vm687, %v892, 0.0
        %925 = vadd.xlane.f32.xlu0 %v924
        %v926 = vpop.xlane.xlu0 %925
        %v927 = vsel %vm687, %v894, 0.0
        %928 = vadd.xlane.f32.xlu0 %v927
        %v929 = vpop.xlane.xlu0 %928
        %v930 = vsel %vm687, %v896, 0.0
        %931 = vadd.xlane.f32.xlu0 %v930
        %v932 = vpop.xlane.xlu0 %931
        %v933 = vsel %vm687, %v898, 0.0
        %934 = vadd.xlane.f32.xlu0 %v933
        %v935 = vpop.xlane.xlu0 %934
        %v936 = vsel %vm687, %v900, 0.0
        %937 = vadd.xlane.f32.xlu0 %v936
        %v938 = vpop.xlane.xlu0 %937
        %v939 = vsel %vm687, %v902, 0.0
        %940 = vadd.xlane.f32.xlu0 %v939
        %v941 = vpop.xlane.xlu0 %940
        %v942 = vsel %vm687, %v904, 0.0
        %943 = vadd.xlane.f32.xlu0 %v942
        %v944 = vpop.xlane.xlu0 %943
        %v945 = vadd.f32 %v913, %v923
        %v946 = vadd.f32 %v914, %v926
        %v947 = vadd.f32 %v915, %v929
        %v948 = vadd.f32 %v916, %v932
        %v949 = vadd.f32 %v917, %v935
        %v950 = vadd.f32 %v918, %v938
        %v951 = vadd.f32 %v919, %v941
        %v952 = vadd.f32 %v920, %v944
        %vm953 = vcmask 7168
        %954 = vst.msk [vmem:[#allocation6] sm:$0xff] %vm953, %v945
        %955 = vst.msk [vmem:[#allocation6 + $0x8] sm:$0xff] %vm953, %v946
        %956 = vst.msk [vmem:[#allocation6 + $0x10] sm:$0xff] %vm953, %v947
        %957 = vst.msk [vmem:[#allocation6 + $0x18] sm:$0xff] %vm953, %v948
        %958 = vst.msk [vmem:[#allocation6 + $0x20] sm:$0xff] %vm953, %v949
        %959 = vst.msk [vmem:[#allocation6 + $0x28] sm:$0xff] %vm953, %v950
        %960 = vst.msk [vmem:[#allocation6 + $0x30] sm:$0xff] %vm953, %v951
        %961 = vst.msk [vmem:[#allocation6 + $0x38] sm:$0xff] %vm953, %v952
        %962 = vst.msk [vmem:[#allocation4] sm:$0xff] %vm953, %v809
        %963 = vst.msk [vmem:[#allocation4 + $0x8] sm:$0xff] %vm953, %v810
        %964 = vst.msk [vmem:[#allocation4 + $0x10] sm:$0xff] %vm953, %v811
        %965 = vst.msk [vmem:[#allocation4 + $0x18] sm:$0xff] %vm953, %v812
        %966 = vst.msk [vmem:[#allocation4 + $0x20] sm:$0xff] %vm953, %v813
        %967 = vst.msk [vmem:[#allocation4 + $0x28] sm:$0xff] %vm953, %v814
        %968 = vst.msk [vmem:[#allocation4 + $0x30] sm:$0xff] %vm953, %v815
        %969 = vst.msk [vmem:[#allocation4 + $0x38] sm:$0xff] %vm953, %v816
        %v971 = vsel %vm687, %v890, 0
        %v974 = vsel %vm687, %v892, 0
        %v977 = vsel %vm687, %v894, 0
        %v980 = vsel %vm687, %v896, 0
        %v983 = vsel %vm687, %v898, 0
        %v986 = vsel %vm687, %v900, 0
        %v989 = vsel %vm687, %v902, 0
        %v992 = vsel %vm687, %v904, 0
        %994 = vmatpush.msra.mxu0 0.0
        %995 = vmatpush.msra.mxu0 0.0
        %996 = vmatpush.msra.mxu0 0.0
        %997 = vmatpush.msra.mxu0 0.0
        %998 = vmatpush.msra.mxu0 0.0
        %999 = vmatpush.msra.mxu0 0.0
        %1000 = vmatpush.msra.mxu0 0.0
        %1001 = vmatpush.msra.mxu0 0.0
        %1002 = vmatpush.msra.mxu0 %v677
        %1003 = vmatpush.msra.mxu0 %v674
        %1004 = vmatpush.msra.mxu0 %v671
        %1005 = vmatpush.msra.mxu0 %v668
        %1006 = vmatpush.msra.mxu0 %v665
        %1007 = vmatpush.msra.mxu0 %v662
        %1008 = vmatpush.msra.mxu0 %v659
        %1009 = vmatpush.msra.mxu0 %v656
        %1010 = vmatmul.f32.gmra.mxu0 %v971
        %v1011 = vpop.f32.mrf.mxu0
        %v1012 = vadd.f32 0.0, %v1011
        %1013 = vmatmul.f32.gmra.mxu0 %v974
        %v1014 = vpop.f32.mrf.mxu0
        %v1015 = vadd.f32 0.0, %v1014
        %1016 = vmatmul.f32.gmra.mxu0 %v977
        %v1017 = vpop.f32.mrf.mxu0
        %v1018 = vadd.f32 0.0, %v1017
        %1019 = vmatmul.f32.gmra.mxu0 %v980
        %v1020 = vpop.f32.mrf.mxu0
        %v1021 = vadd.f32 0.0, %v1020
        %1022 = vmatmul.f32.gmra.mxu0 %v983
        %v1023 = vpop.f32.mrf.mxu0
        %v1024 = vadd.f32 0.0, %v1023
        %1025 = vmatmul.f32.gmra.mxu0 %v986
        %v1026 = vpop.f32.mrf.mxu0
        %v1027 = vadd.f32 0.0, %v1026
        %1028 = vmatmul.f32.gmra.mxu0 %v989
        %v1029 = vpop.f32.mrf.mxu0
        %v1030 = vadd.f32 0.0, %v1029
        %1031 = vmatmul.f32.gmra.mxu0 %v992
        %v1032 = vpop.f32.mrf.mxu0
        %v1033 = vadd.f32 0.0, %v1032
        %1034 = vdwg.mxu0
        %v1035 = vld [vmem:[#allocation3] sm:$0xff]
        %v1036 = vld [vmem:[#allocation3 + $0x8] sm:$0xff]
        %v1037 = vld [vmem:[#allocation3 + $0x10] sm:$0xff]
        %v1038 = vld [vmem:[#allocation3 + $0x18] sm:$0xff]
        %v1039 = vld [vmem:[#allocation3 + $0x20] sm:$0xff]
        %v1040 = vld [vmem:[#allocation3 + $0x28] sm:$0xff]
        %v1041 = vld [vmem:[#allocation3 + $0x30] sm:$0xff]
        %v1042 = vld [vmem:[#allocation3 + $0x38] sm:$0xff]
        %1044 = vset.pattern.permute.xlu0 0
        %1045 = vperm.xlu0 %1044, %v826
        %v1046 = vpop.permute.xlu0 %1045
        %1049 = vset.pattern.permute.xlu0 0
        %1050 = vperm.xlu0 %1049, %v828
        %v1051 = vpop.permute.xlu0 %1050
        %1054 = vset.pattern.permute.xlu0 0
        %1055 = vperm.xlu0 %1054, %v830
        %v1056 = vpop.permute.xlu0 %1055
        %1059 = vset.pattern.permute.xlu0 0
        %1060 = vperm.xlu0 %1059, %v832
        %v1061 = vpop.permute.xlu0 %1060
        %1064 = vset.pattern.permute.xlu0 0
        %1065 = vperm.xlu0 %1064, %v834
        %v1066 = vpop.permute.xlu0 %1065
        %1069 = vset.pattern.permute.xlu0 0
        %1070 = vperm.xlu0 %1069, %v836
        %v1071 = vpop.permute.xlu0 %1070
        %1074 = vset.pattern.permute.xlu0 0
        %1075 = vperm.xlu0 %1074, %v838
        %v1076 = vpop.permute.xlu0 %1075
        %1079 = vset.pattern.permute.xlu0 0
        %1080 = vperm.xlu0 %1079, %v840
        %v1081 = vpop.permute.xlu0 %1080
        %v1083 = vmul.f32 %v1046, %v1035
        %v1084 = vmul.f32 %v1051, %v1036
        %v1085 = vmul.f32 %v1056, %v1037
        %v1086 = vmul.f32 %v1061, %v1038
        %v1087 = vmul.f32 %v1066, %v1039
        %v1088 = vmul.f32 %v1071, %v1040
        %v1089 = vmul.f32 %v1076, %v1041
        %v1090 = vmul.f32 %v1081, %v1042
        %v1091 = vadd.f32 %v1083, %v1012
        %v1092 = vadd.f32 %v1084, %v1015
        %v1093 = vadd.f32 %v1085, %v1018
        %v1094 = vadd.f32 %v1086, %v1021
        %v1095 = vadd.f32 %v1087, %v1024
        %v1096 = vadd.f32 %v1088, %v1027
        %v1097 = vadd.f32 %v1089, %v1030
        %v1098 = vadd.f32 %v1090, %v1033
        %1099 = vst.msk [vmem:[#allocation3] sm:$0xff] %vm687, %v1091
        %1100 = vst.msk [vmem:[#allocation3 + $0x8] sm:$0xff] %vm687, %v1092
        %1101 = vst.msk [vmem:[#allocation3 + $0x10] sm:$0xff] %vm687, %v1093
        %1102 = vst.msk [vmem:[#allocation3 + $0x18] sm:$0xff] %vm687, %v1094
        %1103 = vst.msk [vmem:[#allocation3 + $0x20] sm:$0xff] %vm687, %v1095
        %1104 = vst.msk [vmem:[#allocation3 + $0x28] sm:$0xff] %vm687, %v1096
        %1105 = vst.msk [vmem:[#allocation3 + $0x30] sm:$0xff] %vm687, %v1097
        %1106 = vst.msk [vmem:[#allocation3 + $0x38] sm:$0xff] %vm687, %v1098
        %1107 = vrot.lane.b32.xlu0 %v679, 64
        %v1108 = vpop.permute.xlu0 %1107
        %1109 = vrot.lane.b32.xlu0 %v680, 64
        %v1110 = vpop.permute.xlu0 %1109
        %1111 = vrot.lane.b32.xlu0 %v681, 64
        %v1112 = vpop.permute.xlu0 %1111
        %1113 = vrot.lane.b32.xlu0 %v682, 64
        %v1114 = vpop.permute.xlu0 %1113
        %1115 = vrot.lane.b32.xlu0 %v683, 64
        %v1116 = vpop.permute.xlu0 %1115
        %1117 = vrot.lane.b32.xlu0 %v684, 64
        %v1118 = vpop.permute.xlu0 %1117
        %1119 = vrot.lane.b32.xlu0 %v685, 64
        %v1120 = vpop.permute.xlu0 %1119
        %1121 = vrot.lane.b32.xlu0 %v686, 64
        %v1122 = vpop.permute.xlu0 %1121
        %1123 = vrot.lane.b32.xlu0 %v599, 64
        %v1124 = vpop.permute.xlu0 %1123
        %1125 = vrot.lane.b32.xlu0 %v602, 64
        %v1126 = vpop.permute.xlu0 %1125
        %1127 = vrot.lane.b32.xlu0 %v605, 64
        %v1128 = vpop.permute.xlu0 %1127
        %1129 = vrot.lane.b32.xlu0 %v608, 64
        %v1130 = vpop.permute.xlu0 %1129
        %1131 = vrot.lane.b32.xlu0 %v611, 64
        %v1132 = vpop.permute.xlu0 %1131
        %1133 = vrot.lane.b32.xlu0 %v614, 64
        %v1134 = vpop.permute.xlu0 %1133
        %1135 = vrot.lane.b32.xlu0 %v617, 64
        %v1136 = vpop.permute.xlu0 %1135
        %1137 = vrot.lane.b32.xlu0 %v620, 64
        %v1138 = vpop.permute.xlu0 %1137
        %v1139 = vsel %vm687, %v1108, 0
        %v1141 = vsel %vm687, %v1110, 0
        %v1143 = vsel %vm687, %v1112, 0
        %v1145 = vsel %vm687, %v1114, 0
        %v1147 = vsel %vm687, %v1116, 0
        %v1149 = vsel %vm687, %v1118, 0
        %v1151 = vsel %vm687, %v1120, 0
        %v1153 = vsel %vm687, %v1122, 0
        %v1155 = vsel %vm687, %v1124, 0
        %v1157 = vsel %vm687, %v1126, 0
        %v1159 = vsel %vm687, %v1128, 0
        %v1161 = vsel %vm687, %v1130, 0
        %v1163 = vsel %vm687, %v1132, 0
        %v1165 = vsel %vm687, %v1134, 0
        %v1167 = vsel %vm687, %v1136, 0
        %v1169 = vsel %vm687, %v1138, 0
        %1171 = vmatpush.xpose.msra.mxu0 0.0
        %1172 = vmatpush.xpose.msra.mxu0 0.0
        %1173 = vmatpush.xpose.msra.mxu0 0.0
        %1174 = vmatpush.xpose.msra.mxu0 0.0
        %1175 = vmatpush.xpose.msra.mxu0 0.0
        %1176 = vmatpush.xpose.msra.mxu0 0.0
        %1177 = vmatpush.xpose.msra.mxu0 0.0
        %1178 = vmatpush.xpose.msra.mxu0 0.0
        %1179 = vmatpush.xpose.msra.mxu0 %v1169
        %1180 = vmatpush.xpose.msra.mxu0 %v1167
        %1181 = vmatpush.xpose.msra.mxu0 %v1165
        %1182 = vmatpush.xpose.msra.mxu0 %v1163
        %1183 = vmatpush.xpose.msra.mxu0 %v1161
        %1184 = vmatpush.xpose.msra.mxu0 %v1159
        %1185 = vmatpush.xpose.msra.mxu0 %v1157
        %1186 = vmatpush.xpose.msra.mxu0 %v1155
        %1187 = vmatmul.f32.gmra.mxu0 %v1139
        %v1188 = vpop.f32.mrf.mxu0
        %v1189 = vadd.f32 0.0, %v1188
        %1190 = vmatmul.f32.gmra.mxu0 %v1141
        %v1191 = vpop.f32.mrf.mxu0
        %v1192 = vadd.f32 0.0, %v1191
        %1193 = vmatmul.f32.gmra.mxu0 %v1143
        %v1194 = vpop.f32.mrf.mxu0
        %v1195 = vadd.f32 0.0, %v1194
        %1196 = vmatmul.f32.gmra.mxu0 %v1145
        %v1197 = vpop.f32.mrf.mxu0
        %v1198 = vadd.f32 0.0, %v1197
        %1199 = vmatmul.f32.gmra.mxu0 %v1147
        %v1200 = vpop.f32.mrf.mxu0
        %v1201 = vadd.f32 0.0, %v1200
        %1202 = vmatmul.f32.gmra.mxu0 %v1149
        %v1203 = vpop.f32.mrf.mxu0
        %v1204 = vadd.f32 0.0, %v1203
        %1205 = vmatmul.f32.gmra.mxu0 %v1151
        %v1206 = vpop.f32.mrf.mxu0
        %v1207 = vadd.f32 0.0, %v1206
        %1208 = vmatmul.f32.gmra.mxu0 %v1153
        %v1209 = vpop.f32.mrf.mxu0
        %v1210 = vadd.f32 0.0, %v1209
        %1211 = vdwg.mxu0
        %v1212 = vld [vmem:[#allocation5] sm:$0xff]
        %v1213 = vld [vmem:[#allocation5 + $0x8] sm:$0xff]
        %v1214 = vld [vmem:[#allocation5 + $0x10] sm:$0xff]
        %v1215 = vld [vmem:[#allocation5 + $0x18] sm:$0xff]
        %v1216 = vld [vmem:[#allocation5 + $0x20] sm:$0xff]
        %v1217 = vld [vmem:[#allocation5 + $0x28] sm:$0xff]
        %v1218 = vld [vmem:[#allocation5 + $0x30] sm:$0xff]
        %v1219 = vld [vmem:[#allocation5 + $0x38] sm:$0xff]
        %v1220 = vsel %vm687, %v1189, -inf
        %1221 = vmax.xlane.f32.xlu0 %v1220
        %v1222 = vpop.xlane.xlu0 %1221
        %v1223 = vsel %vm687, %v1192, -inf
        %1224 = vmax.xlane.f32.xlu0 %v1223
        %v1225 = vpop.xlane.xlu0 %1224
        %v1226 = vsel %vm687, %v1195, -inf
        %1227 = vmax.xlane.f32.xlu0 %v1226
        %v1228 = vpop.xlane.xlu0 %1227
        %v1229 = vsel %vm687, %v1198, -inf
        %1230 = vmax.xlane.f32.xlu0 %v1229
        %v1231 = vpop.xlane.xlu0 %1230
        %v1232 = vsel %vm687, %v1201, -inf
        %1233 = vmax.xlane.f32.xlu0 %v1232
        %v1234 = vpop.xlane.xlu0 %1233
        %v1235 = vsel %vm687, %v1204, -inf
        %1236 = vmax.xlane.f32.xlu0 %v1235
        %v1237 = vpop.xlane.xlu0 %1236
        %v1238 = vsel %vm687, %v1207, -inf
        %1239 = vmax.xlane.f32.xlu0 %v1238
        %v1240 = vpop.xlane.xlu0 %1239
        %v1241 = vsel %vm687, %v1210, -inf
        %1242 = vmax.xlane.f32.xlu0 %v1241
        %v1243 = vpop.xlane.xlu0 %1242
        %v1244 = vmax.f32 %v1212, %v1222
        %v1245 = vmax.f32 %v1213, %v1225
        %v1246 = vmax.f32 %v1214, %v1228
        %v1247 = vmax.f32 %v1215, %v1231
        %v1248 = vmax.f32 %v1216, %v1234
        %v1249 = vmax.f32 %v1217, %v1237
        %v1250 = vmax.f32 %v1218, %v1240
        %v1251 = vmax.f32 %v1219, %v1243
        %v1252 = vsub.f32 %v1212, %v1244
        %v1253 = vsub.f32 %v1213, %v1245
        %v1254 = vsub.f32 %v1214, %v1246
        %v1255 = vsub.f32 %v1215, %v1247
        %v1256 = vsub.f32 %v1216, %v1248
        %v1257 = vsub.f32 %v1217, %v1249
        %v1258 = vsub.f32 %v1218, %v1250
        %v1259 = vsub.f32 %v1219, %v1251
        %v1260 = vmul.f32 %v1252, 1.442695
        %v1261 = vpow.pop %v1260
        %v1262 = vmul.f32 %v1253, 1.442695
        %v1263 = vpow.pop %v1262
        %v1264 = vmul.f32 %v1254, 1.442695
        %v1265 = vpow.pop %v1264
        %v1266 = vmul.f32 %v1255, 1.442695
        %v1267 = vpow.pop %v1266
        %v1268 = vmul.f32 %v1256, 1.442695
        %v1269 = vpow.pop %v1268
        %v1270 = vmul.f32 %v1257, 1.442695
        %v1271 = vpow.pop %v1270
        %v1272 = vmul.f32 %v1258, 1.442695
        %v1273 = vpow.pop %v1272
        %v1274 = vmul.f32 %v1259, 1.442695
        %v1275 = vpow.pop %v1274
        %1277 = vset.pattern.permute.xlu0 0
        %1278 = vperm.xlu0 %1277, %v1244
        %v1279 = vpop.permute.xlu0 %1278
        %1282 = vset.pattern.permute.xlu0 0
        %1283 = vperm.xlu0 %1282, %v1245
        %v1284 = vpop.permute.xlu0 %1283
        %1287 = vset.pattern.permute.xlu0 0
        %1288 = vperm.xlu0 %1287, %v1246
        %v1289 = vpop.permute.xlu0 %1288
        %1292 = vset.pattern.permute.xlu0 0
        %1293 = vperm.xlu0 %1292, %v1247
        %v1294 = vpop.permute.xlu0 %1293
        %1297 = vset.pattern.permute.xlu0 0
        %1298 = vperm.xlu0 %1297, %v1248
        %v1299 = vpop.permute.xlu0 %1298
        %1302 = vset.pattern.permute.xlu0 0
        %1303 = vperm.xlu0 %1302, %v1249
        %v1304 = vpop.permute.xlu0 %1303
        %1307 = vset.pattern.permute.xlu0 0
        %1308 = vperm.xlu0 %1307, %v1250
        %v1309 = vpop.permute.xlu0 %1308
        %1312 = vset.pattern.permute.xlu0 0
        %1313 = vperm.xlu0 %1312, %v1251
        %v1314 = vpop.permute.xlu0 %1313
        %v1316 = vsub.f32 %v1189, %v1279
        %v1317 = vsub.f32 %v1192, %v1284
        %v1318 = vsub.f32 %v1195, %v1289
        %v1319 = vsub.f32 %v1198, %v1294
        %v1320 = vsub.f32 %v1201, %v1299
        %v1321 = vsub.f32 %v1204, %v1304
        %v1322 = vsub.f32 %v1207, %v1309
        %v1323 = vsub.f32 %v1210, %v1314
        %v1324 = vmul.f32 %v1316, 1.442695
        %v1325 = vpow.pop %v1324
        %v1326 = vmul.f32 %v1317, 1.442695
        %v1327 = vpow.pop %v1326
        %v1328 = vmul.f32 %v1318, 1.442695
        %v1329 = vpow.pop %v1328
        %v1330 = vmul.f32 %v1319, 1.442695
        %v1331 = vpow.pop %v1330
        %v1332 = vmul.f32 %v1320, 1.442695
        %v1333 = vpow.pop %v1332
        %v1334 = vmul.f32 %v1321, 1.442695
        %v1335 = vpow.pop %v1334
        %v1336 = vmul.f32 %v1322, 1.442695
        %v1337 = vpow.pop %v1336
        %v1338 = vmul.f32 %v1323, 1.442695
        %v1339 = vpow.pop %v1338
        %v1340 = vld [vmem:[#allocation7] sm:$0xff]
        %v1341 = vld [vmem:[#allocation7 + $0x8] sm:$0xff]
        %v1342 = vld [vmem:[#allocation7 + $0x10] sm:$0xff]
        %v1343 = vld [vmem:[#allocation7 + $0x18] sm:$0xff]
        %v1344 = vld [vmem:[#allocation7 + $0x20] sm:$0xff]
        %v1345 = vld [vmem:[#allocation7 + $0x28] sm:$0xff]
        %v1346 = vld [vmem:[#allocation7 + $0x30] sm:$0xff]
        %v1347 = vld [vmem:[#allocation7 + $0x38] sm:$0xff]
        %v1348 = vmul.f32 %v1261, %v1340
        %v1349 = vmul.f32 %v1263, %v1341
        %v1350 = vmul.f32 %v1265, %v1342
        %v1351 = vmul.f32 %v1267, %v1343
        %v1352 = vmul.f32 %v1269, %v1344
        %v1353 = vmul.f32 %v1271, %v1345
        %v1354 = vmul.f32 %v1273, %v1346
        %v1355 = vmul.f32 %v1275, %v1347
        %v1356 = vsel %vm687, %v1325, 0.0
        %1357 = vadd.xlane.f32.xlu0 %v1356
        %v1358 = vpop.xlane.xlu0 %1357
        %v1359 = vsel %vm687, %v1327, 0.0
        %1360 = vadd.xlane.f32.xlu0 %v1359
        %v1361 = vpop.xlane.xlu0 %1360
        %v1362 = vsel %vm687, %v1329, 0.0
        %1363 = vadd.xlane.f32.xlu0 %v1362
        %v1364 = vpop.xlane.xlu0 %1363
        %v1365 = vsel %vm687, %v1331, 0.0
        %1366 = vadd.xlane.f32.xlu0 %v1365
        %v1367 = vpop.xlane.xlu0 %1366
        %v1368 = vsel %vm687, %v1333, 0.0
        %1369 = vadd.xlane.f32.xlu0 %v1368
        %v1370 = vpop.xlane.xlu0 %1369
        %v1371 = vsel %vm687, %v1335, 0.0
        %1372 = vadd.xlane.f32.xlu0 %v1371
        %v1373 = vpop.xlane.xlu0 %1372
        %v1374 = vsel %vm687, %v1337, 0.0
        %1375 = vadd.xlane.f32.xlu0 %v1374
        %v1376 = vpop.xlane.xlu0 %1375
        %v1377 = vsel %vm687, %v1339, 0.0
        %1378 = vadd.xlane.f32.xlu0 %v1377
        %v1379 = vpop.xlane.xlu0 %1378
        %v1380 = vadd.f32 %v1348, %v1358
        %v1381 = vadd.f32 %v1349, %v1361
        %v1382 = vadd.f32 %v1350, %v1364
        %v1383 = vadd.f32 %v1351, %v1367
        %v1384 = vadd.f32 %v1352, %v1370
        %v1385 = vadd.f32 %v1353, %v1373
        %v1386 = vadd.f32 %v1354, %v1376
        %v1387 = vadd.f32 %v1355, %v1379
        %1388 = vst.msk [vmem:[#allocation7] sm:$0xff] %vm953, %v1380
        %1389 = vst.msk [vmem:[#allocation7 + $0x8] sm:$0xff] %vm953, %v1381
        %1390 = vst.msk [vmem:[#allocation7 + $0x10] sm:$0xff] %vm953, %v1382
        %1391 = vst.msk [vmem:[#allocation7 + $0x18] sm:$0xff] %vm953, %v1383
        %1392 = vst.msk [vmem:[#allocation7 + $0x20] sm:$0xff] %vm953, %v1384
        %1393 = vst.msk [vmem:[#allocation7 + $0x28] sm:$0xff] %vm953, %v1385
        %1394 = vst.msk [vmem:[#allocation7 + $0x30] sm:$0xff] %vm953, %v1386
        %1395 = vst.msk [vmem:[#allocation7 + $0x38] sm:$0xff] %vm953, %v1387
        %1396 = vst.msk [vmem:[#allocation5] sm:$0xff] %vm953, %v1244
        %1397 = vst.msk [vmem:[#allocation5 + $0x8] sm:$0xff] %vm953, %v1245
        %1398 = vst.msk [vmem:[#allocation5 + $0x10] sm:$0xff] %vm953, %v1246
        %1399 = vst.msk [vmem:[#allocation5 + $0x18] sm:$0xff] %vm953, %v1247
        %1400 = vst.msk [vmem:[#allocation5 + $0x20] sm:$0xff] %vm953, %v1248
        %1401 = vst.msk [vmem:[#allocation5 + $0x28] sm:$0xff] %vm953, %v1249
        %1402 = vst.msk [vmem:[#allocation5 + $0x30] sm:$0xff] %vm953, %v1250
        %1403 = vst.msk [vmem:[#allocation5 + $0x38] sm:$0xff] %vm953, %v1251
        %1412 = vrot.lane.b32.xlu0 %v656, 64
        %v1413 = vpop.permute.xlu0 %1412
        %1414 = vrot.lane.b32.xlu0 %v659, 64
        %v1415 = vpop.permute.xlu0 %1414
        %1416 = vrot.lane.b32.xlu0 %v662, 64
        %v1417 = vpop.permute.xlu0 %1416
        %1418 = vrot.lane.b32.xlu0 %v665, 64
        %v1419 = vpop.permute.xlu0 %1418
        %1420 = vrot.lane.b32.xlu0 %v668, 64
        %v1421 = vpop.permute.xlu0 %1420
        %1422 = vrot.lane.b32.xlu0 %v671, 64
        %v1423 = vpop.permute.xlu0 %1422
        %1424 = vrot.lane.b32.xlu0 %v674, 64
        %v1425 = vpop.permute.xlu0 %1424
        %1426 = vrot.lane.b32.xlu0 %v677, 64
        %v1427 = vpop.permute.xlu0 %1426
        %v1437 = vsel %vm687, %v1325, 0
        %v1440 = vsel %vm687, %v1327, 0
        %v1443 = vsel %vm687, %v1329, 0
        %v1446 = vsel %vm687, %v1331, 0
        %v1449 = vsel %vm687, %v1333, 0
        %v1452 = vsel %vm687, %v1335, 0
        %v1455 = vsel %vm687, %v1337, 0
        %v1458 = vsel %vm687, %v1339, 0
        %1460 = vmatpush.msra.mxu0 0.0
        %1461 = vmatpush.msra.mxu0 0.0
        %1462 = vmatpush.msra.mxu0 0.0
        %1463 = vmatpush.msra.mxu0 0.0
        %1464 = vmatpush.msra.mxu0 0.0
        %1465 = vmatpush.msra.mxu0 0.0
        %1466 = vmatpush.msra.mxu0 0.0
        %1467 = vmatpush.msra.mxu0 0.0
        %1468 = vmatpush.msra.mxu0 %v1427
        %1469 = vmatpush.msra.mxu0 %v1425
        %1470 = vmatpush.msra.mxu0 %v1423
        %1471 = vmatpush.msra.mxu0 %v1421
        %1472 = vmatpush.msra.mxu0 %v1419
        %1473 = vmatpush.msra.mxu0 %v1417
        %1474 = vmatpush.msra.mxu0 %v1415
        %1475 = vmatpush.msra.mxu0 %v1413
        %1476 = vmatmul.f32.gmra.mxu0 %v1437
        %v1477 = vpop.f32.mrf.mxu0
        %v1478 = vadd.f32 0.0, %v1477
        %1479 = vmatmul.f32.gmra.mxu0 %v1440
        %v1480 = vpop.f32.mrf.mxu0
        %v1481 = vadd.f32 0.0, %v1480
        %1482 = vmatmul.f32.gmra.mxu0 %v1443
        %v1483 = vpop.f32.mrf.mxu0
        %v1484 = vadd.f32 0.0, %v1483
        %1485 = vmatmul.f32.gmra.mxu0 %v1446
        %v1486 = vpop.f32.mrf.mxu0
        %v1487 = vadd.f32 0.0, %v1486
        %1488 = vmatmul.f32.gmra.mxu0 %v1449
        %v1489 = vpop.f32.mrf.mxu0
        %v1490 = vadd.f32 0.0, %v1489
        %1491 = vmatmul.f32.gmra.mxu0 %v1452
        %v1492 = vpop.f32.mrf.mxu0
        %v1493 = vadd.f32 0.0, %v1492
        %1494 = vmatmul.f32.gmra.mxu0 %v1455
        %v1495 = vpop.f32.mrf.mxu0
        %v1496 = vadd.f32 0.0, %v1495
        %1497 = vmatmul.f32.gmra.mxu0 %v1458
        %v1498 = vpop.f32.mrf.mxu0
        %v1499 = vadd.f32 0.0, %v1498
        %1500 = vdwg.mxu0
        %v1501 = vld [vmem:[#allocation3] sm:$0xff]
        %v1502 = vld [vmem:[#allocation3 + $0x8] sm:$0xff]
        %v1503 = vld [vmem:[#allocation3 + $0x10] sm:$0xff]
        %v1504 = vld [vmem:[#allocation3 + $0x18] sm:$0xff]
        %v1505 = vld [vmem:[#allocation3 + $0x20] sm:$0xff]
        %v1506 = vld [vmem:[#allocation3 + $0x28] sm:$0xff]
        %v1507 = vld [vmem:[#allocation3 + $0x30] sm:$0xff]
        %v1508 = vld [vmem:[#allocation3 + $0x38] sm:$0xff]
        %1510 = vset.pattern.permute.xlu0 0
        %1511 = vperm.xlu0 %1510, %v1261
        %v1512 = vpop.permute.xlu0 %1511
        %1515 = vset.pattern.permute.xlu0 0
        %1516 = vperm.xlu0 %1515, %v1263
        %v1517 = vpop.permute.xlu0 %1516
        %1520 = vset.pattern.permute.xlu0 0
        %1521 = vperm.xlu0 %1520, %v1265
        %v1522 = vpop.permute.xlu0 %1521
        %1525 = vset.pattern.permute.xlu0 0
        %1526 = vperm.xlu0 %1525, %v1267
        %v1527 = vpop.permute.xlu0 %1526
        %1530 = vset.pattern.permute.xlu0 0
        %1531 = vperm.xlu0 %1530, %v1269
        %v1532 = vpop.permute.xlu0 %1531
        %1535 = vset.pattern.permute.xlu0 0
        %1536 = vperm.xlu0 %1535, %v1271
        %v1537 = vpop.permute.xlu0 %1536
        %1540 = vset.pattern.permute.xlu0 0
        %1541 = vperm.xlu0 %1540, %v1273
        %v1542 = vpop.permute.xlu0 %1541
        %1545 = vset.pattern.permute.xlu0 0
        %1546 = vperm.xlu0 %1545, %v1275
        %v1547 = vpop.permute.xlu0 %1546
        %v1549 = vmul.f32 %v1512, %v1501
        %v1550 = vmul.f32 %v1517, %v1502
        %v1551 = vmul.f32 %v1522, %v1503
        %v1552 = vmul.f32 %v1527, %v1504
        %v1553 = vmul.f32 %v1532, %v1505
        %v1554 = vmul.f32 %v1537, %v1506
        %v1555 = vmul.f32 %v1542, %v1507
        %v1556 = vmul.f32 %v1547, %v1508
        %1565 = vrot.lane.b32.xlu0 %v1478, 64
        %v1566 = vpop.permute.xlu0 %1565
        %1567 = vrot.lane.b32.xlu0 %v1481, 64
        %v1568 = vpop.permute.xlu0 %1567
        %1569 = vrot.lane.b32.xlu0 %v1484, 64
        %v1570 = vpop.permute.xlu0 %1569
        %1571 = vrot.lane.b32.xlu0 %v1487, 64
        %v1572 = vpop.permute.xlu0 %1571
        %1573 = vrot.lane.b32.xlu0 %v1490, 64
        %v1574 = vpop.permute.xlu0 %1573
        %1575 = vrot.lane.b32.xlu0 %v1493, 64
        %v1576 = vpop.permute.xlu0 %1575
        %1577 = vrot.lane.b32.xlu0 %v1496, 64
        %v1578 = vpop.permute.xlu0 %1577
        %1579 = vrot.lane.b32.xlu0 %v1499, 64
        %v1580 = vpop.permute.xlu0 %1579
        %v1589 = vadd.f32 %v1549, %v1566
        %v1590 = vadd.f32 %v1550, %v1568
        %v1591 = vadd.f32 %v1551, %v1570
        %v1592 = vadd.f32 %v1552, %v1572
        %v1593 = vadd.f32 %v1553, %v1574
        %v1594 = vadd.f32 %v1554, %v1576
        %v1595 = vadd.f32 %v1555, %v1578
        %v1596 = vadd.f32 %v1556, %v1580
        %vm1597 = vcmask 1048064
        %1598 = vst.msk [vmem:[#allocation3] sm:$0xff] %vm1597, %v1589
        %1599 = vst.msk [vmem:[#allocation3 + $0x8] sm:$0xff] %vm1597, %v1590
        %1600 = vst.msk [vmem:[#allocation3 + $0x10] sm:$0xff] %vm1597, %v1591
        %1601 = vst.msk [vmem:[#allocation3 + $0x18] sm:$0xff] %vm1597, %v1592
        %1602 = vst.msk [vmem:[#allocation3 + $0x20] sm:$0xff] %vm1597, %v1593
        %1603 = vst.msk [vmem:[#allocation3 + $0x28] sm:$0xff] %vm1597, %v1594
        %1604 = vst.msk [vmem:[#allocation3 + $0x30] sm:$0xff] %vm1597, %v1595
        %1605 = vst.msk [vmem:[#allocation3 + $0x38] sm:$0xff] %vm1597, %v1596
        %p1606 = scmp.eq.s32.totalorder %s36, 1
        // Predicated region
        $region77: #{tpu_custom_call.1} parent=47 // pred_check
          %p1607 = pneg %p1606
        $region78: #{tpu_custom_call.1} parent=47 // pred_check_branch
          %1609 = sbr.rel (%p1607) target = $region80
        $region79: #{tpu_custom_call.1} parent=47 // pred_region
          %v1610 = vld [vmem:[#allocation3] sm:$0xff]
          %v1611 = vld [vmem:[#allocation3 + $0x8] sm:$0xff]
          %v1612 = vld [vmem:[#allocation3 + $0x10] sm:$0xff]
          %v1613 = vld [vmem:[#allocation3 + $0x18] sm:$0xff]
          %v1614 = vld [vmem:[#allocation3 + $0x20] sm:$0xff]
          %v1615 = vld [vmem:[#allocation3 + $0x28] sm:$0xff]
          %v1616 = vld [vmem:[#allocation3 + $0x30] sm:$0xff]
          %v1617 = vld [vmem:[#allocation3 + $0x38] sm:$0xff]
          %v1618 = vld [vmem:[#allocation6] sm:$0xff]
          %v1619 = vld [vmem:[#allocation6 + $0x8] sm:$0xff]
          %v1620 = vld [vmem:[#allocation6 + $0x10] sm:$0xff]
          %v1621 = vld [vmem:[#allocation6 + $0x18] sm:$0xff]
          %v1622 = vld [vmem:[#allocation6 + $0x20] sm:$0xff]
          %v1623 = vld [vmem:[#allocation6 + $0x28] sm:$0xff]
          %v1624 = vld [vmem:[#allocation6 + $0x30] sm:$0xff]
          %v1625 = vld [vmem:[#allocation6 + $0x38] sm:$0xff]
          %1627 = vset.pattern.permute.xlu0 0
          %1628 = vperm.xlu0 %1627, %v1618
          %v1629 = vpop.permute.xlu0 %1628
          %1632 = vset.pattern.permute.xlu0 0
          %1633 = vperm.xlu0 %1632, %v1619
          %v1634 = vpop.permute.xlu0 %1633
          %1637 = vset.pattern.permute.xlu0 0
          %1638 = vperm.xlu0 %1637, %v1620
          %v1639 = vpop.permute.xlu0 %1638
          %1642 = vset.pattern.permute.xlu0 0
          %1643 = vperm.xlu0 %1642, %v1621
          %v1644 = vpop.permute.xlu0 %1643
          %1647 = vset.pattern.permute.xlu0 0
          %1648 = vperm.xlu0 %1647, %v1622
          %v1649 = vpop.permute.xlu0 %1648
          %1652 = vset.pattern.permute.xlu0 0
          %1653 = vperm.xlu0 %1652, %v1623
          %v1654 = vpop.permute.xlu0 %1653
          %1657 = vset.pattern.permute.xlu0 0
          %1658 = vperm.xlu0 %1657, %v1624
          %v1659 = vpop.permute.xlu0 %1658
          %1662 = vset.pattern.permute.xlu0 0
          %1663 = vperm.xlu0 %1662, %v1625
          %v1664 = vpop.permute.xlu0 %1663
          %v1666 = vrcp.pop %v1629
          %v1667 = vmul.f32 %v1629, %v1666
          %v1668 = vsub.f32 1.0, %v1667
          %v1669 = vmul.f32 %v1666, %v1668
          %v1670 = vadd.f32 %v1666, %v1669
          %vm1671 = vweird.f32 %v1629
          %vm1672 = vweird.f32 %v1666
          %vm1673 = vmor %vm1671, %vm1672
          %v1674 = vsel %vm1673, %v1666, %v1670
          %v1675 = vand.u32 2147483647, %v1629
          %vm1676 = vcmp.eq.f32.partialorder %v1675, 8.507059e+37
          %v1677 = vand.u32 %v1629, 2147483648
          %v1678 = vor.u32 1.1754944e-38, %v1677
          %v1679 = vsel %vm1676, %v1678, %v1674
          %v1680 = vmul.f32 %v1610, %v1679
          %v1681 = vrcp.pop %v1634
          %v1682 = vmul.f32 %v1634, %v1681
          %v1683 = vsub.f32 1.0, %v1682
          %v1684 = vmul.f32 %v1681, %v1683
          %v1685 = vadd.f32 %v1681, %v1684
          %vm1686 = vweird.f32 %v1634
          %vm1687 = vweird.f32 %v1681
          %vm1688 = vmor %vm1686, %vm1687
          %v1689 = vsel %vm1688, %v1681, %v1685
          %v1690 = vand.u32 2147483647, %v1634
          %vm1691 = vcmp.eq.f32.partialorder %v1690, 8.507059e+37
          %v1692 = vand.u32 %v1634, 2147483648
          %v1693 = vor.u32 1.1754944e-38, %v1692
          %v1694 = vsel %vm1691, %v1693, %v1689
          %v1695 = vmul.f32 %v1611, %v1694
          %v1696 = vrcp.pop %v1639
          %v1697 = vmul.f32 %v1639, %v1696
          %v1698 = vsub.f32 1.0, %v1697
          %v1699 = vmul.f32 %v1696, %v1698
          %v1700 = vadd.f32 %v1696, %v1699
          %vm1701 = vweird.f32 %v1639
          %vm1702 = vweird.f32 %v1696
          %vm1703 = vmor %vm1701, %vm1702
          %v1704 = vsel %vm1703, %v1696, %v1700
          %v1705 = vand.u32 2147483647, %v1639
          %vm1706 = vcmp.eq.f32.partialorder %v1705, 8.507059e+37
          %v1707 = vand.u32 %v1639, 2147483648
          %v1708 = vor.u32 1.1754944e-38, %v1707
          %v1709 = vsel %vm1706, %v1708, %v1704
          %v1710 = vmul.f32 %v1612, %v1709
          %v1711 = vrcp.pop %v1644
          %v1712 = vmul.f32 %v1644, %v1711
          %v1713 = vsub.f32 1.0, %v1712
          %v1714 = vmul.f32 %v1711, %v1713
          %v1715 = vadd.f32 %v1711, %v1714
          %vm1716 = vweird.f32 %v1644
          %vm1717 = vweird.f32 %v1711
          %vm1718 = vmor %vm1716, %vm1717
          %v1719 = vsel %vm1718, %v1711, %v1715
          %v1720 = vand.u32 2147483647, %v1644
          %vm1721 = vcmp.eq.f32.partialorder %v1720, 8.507059e+37
          %v1722 = vand.u32 %v1644, 2147483648
          %v1723 = vor.u32 1.1754944e-38, %v1722
          %v1724 = vsel %vm1721, %v1723, %v1719
          %v1725 = vmul.f32 %v1613, %v1724
          %v1726 = vrcp.pop %v1649
          %v1727 = vmul.f32 %v1649, %v1726
          %v1728 = vsub.f32 1.0, %v1727
          %v1729 = vmul.f32 %v1726, %v1728
          %v1730 = vadd.f32 %v1726, %v1729
          %vm1731 = vweird.f32 %v1649
          %vm1732 = vweird.f32 %v1726
          %vm1733 = vmor %vm1731, %vm1732
          %v1734 = vsel %vm1733, %v1726, %v1730
          %v1735 = vand.u32 2147483647, %v1649
          %vm1736 = vcmp.eq.f32.partialorder %v1735, 8.507059e+37
          %v1737 = vand.u32 %v1649, 2147483648
          %v1738 = vor.u32 1.1754944e-38, %v1737
          %v1739 = vsel %vm1736, %v1738, %v1734
          %v1740 = vmul.f32 %v1614, %v1739
          %v1741 = vrcp.pop %v1654
          %v1742 = vmul.f32 %v1654, %v1741
          %v1743 = vsub.f32 1.0, %v1742
          %v1744 = vmul.f32 %v1741, %v1743
          %v1745 = vadd.f32 %v1741, %v1744
          %vm1746 = vweird.f32 %v1654
          %vm1747 = vweird.f32 %v1741
          %vm1748 = vmor %vm1746, %vm1747
          %v1749 = vsel %vm1748, %v1741, %v1745
          %v1750 = vand.u32 2147483647, %v1654
          %vm1751 = vcmp.eq.f32.partialorder %v1750, 8.507059e+37
          %v1752 = vand.u32 %v1654, 2147483648
          %v1753 = vor.u32 1.1754944e-38, %v1752
          %v1754 = vsel %vm1751, %v1753, %v1749
          %v1755 = vmul.f32 %v1615, %v1754
          %v1756 = vrcp.pop %v1659
          %v1757 = vmul.f32 %v1659, %v1756
          %v1758 = vsub.f32 1.0, %v1757
          %v1759 = vmul.f32 %v1756, %v1758
          %v1760 = vadd.f32 %v1756, %v1759
          %vm1761 = vweird.f32 %v1659
          %vm1762 = vweird.f32 %v1756
          %vm1763 = vmor %vm1761, %vm1762
          %v1764 = vsel %vm1763, %v1756, %v1760
          %v1765 = vand.u32 2147483647, %v1659
          %vm1766 = vcmp.eq.f32.partialorder %v1765, 8.507059e+37
          %v1767 = vand.u32 %v1659, 2147483648
          %v1768 = vor.u32 1.1754944e-38, %v1767
          %v1769 = vsel %vm1766, %v1768, %v1764
          %v1770 = vmul.f32 %v1616, %v1769
          %v1771 = vrcp.pop %v1664
          %v1772 = vmul.f32 %v1664, %v1771
          %v1773 = vsub.f32 1.0, %v1772
          %v1774 = vmul.f32 %v1771, %v1773
          %v1775 = vadd.f32 %v1771, %v1774
          %vm1776 = vweird.f32 %v1664
          %vm1777 = vweird.f32 %v1771
          %vm1778 = vmor %vm1776, %vm1777
          %v1779 = vsel %vm1778, %v1771, %v1775
          %v1780 = vand.u32 2147483647, %v1664
          %vm1781 = vcmp.eq.f32.partialorder %v1780, 8.507059e+37
          %v1782 = vand.u32 %v1664, 2147483648
          %v1783 = vor.u32 1.1754944e-38, %v1782
          %v1784 = vsel %vm1781, %v1783, %v1779
          %v1785 = vmul.f32 %v1617, %v1784
          %1786 = vst.msk [vmem:[#allocation3] sm:$0xff] %vm687, %v1680
          %1787 = vst.msk [vmem:[#allocation3 + $0x8] sm:$0xff] %vm687, %v1695
          %1788 = vst.msk [vmem:[#allocation3 + $0x10] sm:$0xff] %vm687, %v1710
          %1789 = vst.msk [vmem:[#allocation3 + $0x18] sm:$0xff] %vm687, %v1725
          %1790 = vst.msk [vmem:[#allocation3 + $0x20] sm:$0xff] %vm687, %v1740
          %1791 = vst.msk [vmem:[#allocation3 + $0x28] sm:$0xff] %vm687, %v1755
          %1792 = vst.msk [vmem:[#allocation3 + $0x30] sm:$0xff] %vm687, %v1770
          %1793 = vst.msk [vmem:[#allocation3 + $0x38] sm:$0xff] %vm687, %v1785
          %v1794 = vld [vmem:[#allocation3] sm:$0xff]
          %v1795 = vld [vmem:[#allocation3 + $0x8] sm:$0xff]
          %v1796 = vld [vmem:[#allocation3 + $0x10] sm:$0xff]
          %v1797 = vld [vmem:[#allocation3 + $0x18] sm:$0xff]
          %v1798 = vld [vmem:[#allocation3 + $0x20] sm:$0xff]
          %v1799 = vld [vmem:[#allocation3 + $0x28] sm:$0xff]
          %v1800 = vld [vmem:[#allocation3 + $0x30] sm:$0xff]
          %v1801 = vld [vmem:[#allocation3 + $0x38] sm:$0xff]
          %v1802 = vld [vmem:[#allocation7] sm:$0xff]
          %v1803 = vld [vmem:[#allocation7 + $0x8] sm:$0xff]
          %v1804 = vld [vmem:[#allocation7 + $0x10] sm:$0xff]
          %v1805 = vld [vmem:[#allocation7 + $0x18] sm:$0xff]
          %v1806 = vld [vmem:[#allocation7 + $0x20] sm:$0xff]
          %v1807 = vld [vmem:[#allocation7 + $0x28] sm:$0xff]
          %v1808 = vld [vmem:[#allocation7 + $0x30] sm:$0xff]
          %v1809 = vld [vmem:[#allocation7 + $0x38] sm:$0xff]
          %1811 = vset.pattern.permute.xlu0 0
          %1812 = vperm.xlu0 %1811, %v1802
          %v1813 = vpop.permute.xlu0 %1812
          %1816 = vset.pattern.permute.xlu0 0
          %1817 = vperm.xlu0 %1816, %v1803
          %v1818 = vpop.permute.xlu0 %1817
          %1821 = vset.pattern.permute.xlu0 0
          %1822 = vperm.xlu0 %1821, %v1804
          %v1823 = vpop.permute.xlu0 %1822
          %1826 = vset.pattern.permute.xlu0 0
          %1827 = vperm.xlu0 %1826, %v1805
          %v1828 = vpop.permute.xlu0 %1827
          %1831 = vset.pattern.permute.xlu0 0
          %1832 = vperm.xlu0 %1831, %v1806
          %v1833 = vpop.permute.xlu0 %1832
          %1836 = vset.pattern.permute.xlu0 0
          %1837 = vperm.xlu0 %1836, %v1807
          %v1838 = vpop.permute.xlu0 %1837
          %1841 = vset.pattern.permute.xlu0 0
          %1842 = vperm.xlu0 %1841, %v1808
          %v1843 = vpop.permute.xlu0 %1842
          %1846 = vset.pattern.permute.xlu0 0
          %1847 = vperm.xlu0 %1846, %v1809
          %v1848 = vpop.permute.xlu0 %1847
          %v1850 = vrcp.pop %v1813
          %v1851 = vmul.f32 %v1813, %v1850
          %v1852 = vsub.f32 1.0, %v1851
          %v1853 = vmul.f32 %v1850, %v1852
          %v1854 = vadd.f32 %v1850, %v1853
          %vm1855 = vweird.f32 %v1813
          %vm1856 = vweird.f32 %v1850
          %vm1857 = vmor %vm1855, %vm1856
          %v1858 = vsel %vm1857, %v1850, %v1854
          %v1859 = vand.u32 2147483647, %v1813
          %vm1860 = vcmp.eq.f32.partialorder %v1859, 8.507059e+37
          %v1861 = vand.u32 %v1813, 2147483648
          %v1862 = vor.u32 1.1754944e-38, %v1861
          %v1863 = vsel %vm1860, %v1862, %v1858
          %v1864 = vmul.f32 %v1794, %v1863
          %v1865 = vrcp.pop %v1818
          %v1866 = vmul.f32 %v1818, %v1865
          %v1867 = vsub.f32 1.0, %v1866
          %v1868 = vmul.f32 %v1865, %v1867
          %v1869 = vadd.f32 %v1865, %v1868
          %vm1870 = vweird.f32 %v1818
          %vm1871 = vweird.f32 %v1865
          %vm1872 = vmor %vm1870, %vm1871
          %v1873 = vsel %vm1872, %v1865, %v1869
          %v1874 = vand.u32 2147483647, %v1818
          %vm1875 = vcmp.eq.f32.partialorder %v1874, 8.507059e+37
          %v1876 = vand.u32 %v1818, 2147483648
          %v1877 = vor.u32 1.1754944e-38, %v1876
          %v1878 = vsel %vm1875, %v1877, %v1873
          %v1879 = vmul.f32 %v1795, %v1878
          %v1880 = vrcp.pop %v1823
          %v1881 = vmul.f32 %v1823, %v1880
          %v1882 = vsub.f32 1.0, %v1881
          %v1883 = vmul.f32 %v1880, %v1882
          %v1884 = vadd.f32 %v1880, %v1883
          %vm1885 = vweird.f32 %v1823
          %vm1886 = vweird.f32 %v1880
          %vm1887 = vmor %vm1885, %vm1886
          %v1888 = vsel %vm1887, %v1880, %v1884
          %v1889 = vand.u32 2147483647, %v1823
          %vm1890 = vcmp.eq.f32.partialorder %v1889, 8.507059e+37
          %v1891 = vand.u32 %v1823, 2147483648
          %v1892 = vor.u32 1.1754944e-38, %v1891
          %v1893 = vsel %vm1890, %v1892, %v1888
          %v1894 = vmul.f32 %v1796, %v1893
          %v1895 = vrcp.pop %v1828
          %v1896 = vmul.f32 %v1828, %v1895
          %v1897 = vsub.f32 1.0, %v1896
          %v1898 = vmul.f32 %v1895, %v1897
          %v1899 = vadd.f32 %v1895, %v1898
          %vm1900 = vweird.f32 %v1828
          %vm1901 = vweird.f32 %v1895
          %vm1902 = vmor %vm1900, %vm1901
          %v1903 = vsel %vm1902, %v1895, %v1899
          %v1904 = vand.u32 2147483647, %v1828
          %vm1905 = vcmp.eq.f32.partialorder %v1904, 8.507059e+37
          %v1906 = vand.u32 %v1828, 2147483648
          %v1907 = vor.u32 1.1754944e-38, %v1906
          %v1908 = vsel %vm1905, %v1907, %v1903
          %v1909 = vmul.f32 %v1797, %v1908
          %v1910 = vrcp.pop %v1833
          %v1911 = vmul.f32 %v1833, %v1910
          %v1912 = vsub.f32 1.0, %v1911
          %v1913 = vmul.f32 %v1910, %v1912
          %v1914 = vadd.f32 %v1910, %v1913
          %vm1915 = vweird.f32 %v1833
          %vm1916 = vweird.f32 %v1910
          %vm1917 = vmor %vm1915, %vm1916
          %v1918 = vsel %vm1917, %v1910, %v1914
          %v1919 = vand.u32 2147483647, %v1833
          %vm1920 = vcmp.eq.f32.partialorder %v1919, 8.507059e+37
          %v1921 = vand.u32 %v1833, 2147483648
          %v1922 = vor.u32 1.1754944e-38, %v1921
          %v1923 = vsel %vm1920, %v1922, %v1918
          %v1924 = vmul.f32 %v1798, %v1923
          %v1925 = vrcp.pop %v1838
          %v1926 = vmul.f32 %v1838, %v1925
          %v1927 = vsub.f32 1.0, %v1926
          %v1928 = vmul.f32 %v1925, %v1927
          %v1929 = vadd.f32 %v1925, %v1928
          %vm1930 = vweird.f32 %v1838
          %vm1931 = vweird.f32 %v1925
          %vm1932 = vmor %vm1930, %vm1931
          %v1933 = vsel %vm1932, %v1925, %v1929
          %v1934 = vand.u32 2147483647, %v1838
          %vm1935 = vcmp.eq.f32.partialorder %v1934, 8.507059e+37
          %v1936 = vand.u32 %v1838, 2147483648
          %v1937 = vor.u32 1.1754944e-38, %v1936
          %v1938 = vsel %vm1935, %v1937, %v1933
          %v1939 = vmul.f32 %v1799, %v1938
          %v1940 = vrcp.pop %v1843
          %v1941 = vmul.f32 %v1843, %v1940
          %v1942 = vsub.f32 1.0, %v1941
          %v1943 = vmul.f32 %v1940, %v1942
          %v1944 = vadd.f32 %v1940, %v1943
          %vm1945 = vweird.f32 %v1843
          %vm1946 = vweird.f32 %v1940
          %vm1947 = vmor %vm1945, %vm1946
          %v1948 = vsel %vm1947, %v1940, %v1944
          %v1949 = vand.u32 2147483647, %v1843
          %vm1950 = vcmp.eq.f32.partialorder %v1949, 8.507059e+37
          %v1951 = vand.u32 %v1843, 2147483648
          %v1952 = vor.u32 1.1754944e-38, %v1951
          %v1953 = vsel %vm1950, %v1952, %v1948
          %v1954 = vmul.f32 %v1800, %v1953
          %v1955 = vrcp.pop %v1848
          %v1956 = vmul.f32 %v1848, %v1955
          %v1957 = vsub.f32 1.0, %v1956
          %v1958 = vmul.f32 %v1955, %v1957
          %v1959 = vadd.f32 %v1955, %v1958
          %vm1960 = vweird.f32 %v1848
          %vm1961 = vweird.f32 %v1955
          %vm1962 = vmor %vm1960, %vm1961
          %v1963 = vsel %vm1962, %v1955, %v1959
          %v1964 = vand.u32 2147483647, %v1848
          %vm1965 = vcmp.eq.f32.partialorder %v1964, 8.507059e+37
          %v1966 = vand.u32 %v1848, 2147483648
          %v1967 = vor.u32 1.1754944e-38, %v1966
          %v1968 = vsel %vm1965, %v1967, %v1963
          %v1969 = vmul.f32 %v1801, %v1968
          %1970 = vst.msk [vmem:[#allocation3] sm:$0xff] %vm1597, %v1864
          %1971 = vst.msk [vmem:[#allocation3 + $0x8] sm:$0xff] %vm1597, %v1879
          %1972 = vst.msk [vmem:[#allocation3 + $0x10] sm:$0xff] %vm1597, %v1894
          %1973 = vst.msk [vmem:[#allocation3 + $0x18] sm:$0xff] %vm1597, %v1909
          %1974 = vst.msk [vmem:[#allocation3 + $0x20] sm:$0xff] %vm1597, %v1924
          %1975 = vst.msk [vmem:[#allocation3 + $0x28] sm:$0xff] %vm1597, %v1939
          %1976 = vst.msk [vmem:[#allocation3 + $0x30] sm:$0xff] %vm1597, %v1954
          %1977 = vst.msk [vmem:[#allocation3 + $0x38] sm:$0xff] %vm1597, %v1969
          %v1978 = vld [vmem:[#allocation3] sm:$0xff]
          %v1979 = vld [vmem:[#allocation3 + $0x8] sm:$0xff]
          %v1980 = vld [vmem:[#allocation3 + $0x10] sm:$0xff]
          %v1981 = vld [vmem:[#allocation3 + $0x18] sm:$0xff]
          %v1982 = vld [vmem:[#allocation3 + $0x20] sm:$0xff]
          %v1983 = vld [vmem:[#allocation3 + $0x28] sm:$0xff]
          %v1984 = vld [vmem:[#allocation3 + $0x30] sm:$0xff]
          %v1985 = vld [vmem:[#allocation3 + $0x38] sm:$0xff]
          %v1986 = vld [vmem:[#allocation17] sm:$0xff]
          %v1987 = vld [vmem:[#allocation17 + $0x8] sm:$0xff]
          %v1988 = vld [vmem:[#allocation17 + $0x10] sm:$0xff]
          %v1989 = vld [vmem:[#allocation17 + $0x18] sm:$0xff]
          %v1990 = vld [vmem:[#allocation17 + $0x20] sm:$0xff]
          %v1991 = vld [vmem:[#allocation17 + $0x28] sm:$0xff]
          %v1992 = vld [vmem:[#allocation17 + $0x30] sm:$0xff]
          %v1993 = vld [vmem:[#allocation17 + $0x38] sm:$0xff]
          %v1994 = vld [vmem:[#allocation17 + $0x40] sm:$0xff]
          %v1995 = vld [vmem:[#allocation17 + $0x48] sm:$0xff]
          %v1996 = vld [vmem:[#allocation17 + $0x50] sm:$0xff]
          %v1997 = vld [vmem:[#allocation17 + $0x58] sm:$0xff]
          %v1998 = vld [vmem:[#allocation17 + $0x60] sm:$0xff]
          %v1999 = vld [vmem:[#allocation17 + $0x68] sm:$0xff]
          %v2000 = vld [vmem:[#allocation17 + $0x70] sm:$0xff]
          %v2001 = vld [vmem:[#allocation17 + $0x78] sm:$0xff]
          %v2002 = vld [vmem:[%s6] sm:$0x1]
          %v2004 = vperm.slane %v2002, 0
          %2006 = vmatpush.msra.mxu0 %v2001
          %2007 = vmatpush.msra.mxu0 %v2000
          %2008 = vmatpush.msra.mxu0 %v1999
          %2009 = vmatpush.msra.mxu0 %v1998
          %2010 = vmatpush.msra.mxu0 %v1997
          %2011 = vmatpush.msra.mxu0 %v1996
          %2012 = vmatpush.msra.mxu0 %v1995
          %2013 = vmatpush.msra.mxu0 %v1994
          %2014 = vmatpush.msra.mxu0 %v1993
          %2015 = vmatpush.msra.mxu0 %v1992
          %2016 = vmatpush.msra.mxu0 %v1991
          %2017 = vmatpush.msra.mxu0 %v1990
          %2018 = vmatpush.msra.mxu0 %v1989
          %2019 = vmatpush.msra.mxu0 %v1988
          %2020 = vmatpush.msra.mxu0 %v1987
          %2021 = vmatpush.msra.mxu0 %v1986
          %2022 = vmatmul.f32.gmra.mxu0 %v1978
          %v2023 = vpop.f32.mrf.mxu0
          %v2024 = vadd.f32 %v2004, %v2023
          %2025 = vmatmul.f32.gmra.mxu0 %v1979
          %v2026 = vpop.f32.mrf.mxu0
          %v2027 = vadd.f32 %v2004, %v2026
          %2028 = vmatmul.f32.gmra.mxu0 %v1980
          %v2029 = vpop.f32.mrf.mxu0
          %v2030 = vadd.f32 %v2004, %v2029
          %2031 = vmatmul.f32.gmra.mxu0 %v1981
          %v2032 = vpop.f32.mrf.mxu0
          %v2033 = vadd.f32 %v2004, %v2032
          %2034 = vmatmul.f32.gmra.mxu0 %v1982
          %v2035 = vpop.f32.mrf.mxu0
          %v2036 = vadd.f32 %v2004, %v2035
          %2037 = vmatmul.f32.gmra.mxu0 %v1983
          %v2038 = vpop.f32.mrf.mxu0
          %v2039 = vadd.f32 %v2004, %v2038
          %2040 = vmatmul.f32.gmra.mxu0 %v1984
          %v2041 = vpop.f32.mrf.mxu0
          %v2042 = vadd.f32 %v2004, %v2041
          %2043 = vmatmul.f32.gmra.mxu0 %v1985
          %v2044 = vpop.f32.mrf.mxu0
          %v2045 = vadd.f32 %v2004, %v2044
          %2046 = vdwg.mxu0
          %2047 = vst [vmem:[%s435] sm:$0xff] %v2024
          %2048 = vst [vmem:[%s435 + $0x8] sm:$0xff] %v2027
          %2049 = vst [vmem:[%s435 + $0x10] sm:$0xff] %v2030
          %2050 = vst [vmem:[%s435 + $0x18] sm:$0xff] %v2033
          %2051 = vst [vmem:[%s435 + $0x20] sm:$0xff] %v2036
          %2052 = vst [vmem:[%s435 + $0x28] sm:$0xff] %v2039
          %2053 = vst [vmem:[%s435 + $0x30] sm:$0xff] %v2042
          %2054 = vst [vmem:[%s435 + $0x38] sm:$0xff] %v2045
        $region80: #{tpu_custom_call.1} parent=47 // pred_fallthru
          _
        %s2055 = sand.u32 %s219, 1
        %s2056 = scalar_lea.sflag [#allocation10], %s2055
        %s2057 = sand.u32 %s219, 1
        %s2058 = smul.addr %s2057, 64
        %s2059 = scalar_lea.vmem [#allocation19], %s2058
        // Predicated region
        $region81: #{tpu_custom_call.1} parent=47 // pred_check
          %p2060 = pneg %p229
        $region82: #{tpu_custom_call.1} parent=47 // pred_check_branch
          %2062 = sbr.rel (%p2060) target = $region84
        $region83: #{tpu_custom_call.1} parent=47 // pred_region
          %s2063 = smul.u32 8, %s35
          %2065 = vsyncadd %s2056, 0
          %s2066 = smul.addr %s34, 16
          %s2067 = sadd.s32 %s2063, %s2066
          %s2068 = smul.addr %s2067, 8
          %s2069 = scalar_lea.hbm %s7, %s2068
          %s2070 = sshll.u32 %s2059, 4
          %s2071 = int_to_ptr.vmem [resolvable:$true] %s2070
          %s2072 = sshll.u32 %s2069, 4
          %s2073 = int_to_ptr.hbm [resolvable:$true] %s2072
          %2078 = dma.vmem_to_hbm [thread:$0]  %s2071, 1024, %s2073, %s2056, 128, 128, 8
        $region84: #{tpu_custom_call.1} parent=47 // pred_fallthru
          _
      $region48: #{tpu_custom_call.1} parent=5 // pred_fallthru
        _
      %p2079 = scmp.le.s32.totalorder 2, %s24
      // Predicated region
      $region85: #{tpu_custom_call.1} parent=5 // pred_check
        %p2080 = pneg %p2079
      $region86: #{tpu_custom_call.1} parent=5 // pred_check_branch
        %2082 = sbr.rel (%p2080) target = $region88
      $region87: #{tpu_custom_call.1} parent=5 // pred_region
        %s2083 = ssub.s32 %s24, 2
        // Predicated region
        $region89: #{tpu_custom_call.1} parent=87 // pred_check
          %p2084 = pneg %p235
        $region90: #{tpu_custom_call.1} parent=87 // pred_check_branch
          %2086 = sbr.rel (%p2084) target = $region92
        $region91: #{tpu_custom_call.1} parent=87 // pred_region
          %s2087 = sand.u32 %s220, 1
          %s2088 = scalar_lea.sflag [#allocation10], %s2087
          %s2089 = sand.u32 %s220, 1
          %s2090 = smul.addr %s2089, 64
          %s2091 = scalar_lea.vmem [#allocation19], %s2090
          %2093 = dma.done %s2088, 1024
        $region92: #{tpu_custom_call.1} parent=87 // pred_fallthru
          _
      $region88: #{tpu_custom_call.1} parent=5 // pred_fallthru
        _
    $region6: #{tpu_custom_call.1} parent=1 // loop_footer
      %s28 = sadd.s32 1, %s24
    $region7: #{tpu_custom_call.1} parent=1 // loop_footer_branch
      %23 = sbr.rel target = $region3
    $region8: #{tpu_custom_call.1} parent=1 // loop_exit
      _
    %2094 = vsyncpa [#allocation9], 1
    %s2095 = scalar_lea.sflag [#allocation9], 1
    %2096 = vsyncpa %s2095, 1
    %2097 = vsyncpa [#allocation12], 1
    %s2098 = scalar_lea.sflag [#allocation12], 1
    %2099 = vsyncpa %s2098, 1
    %2100 = vsyncpa [#allocation15], 1
    %2101 = vsyncpa [#allocation18], 1
    %2102 = vsyncpa [#allocation10], 1
    %s2103 = scalar_lea.sflag [#allocation10], 1
    %2104 = vsyncpa %s2103, 1

</llo_original>
